<compile_context>
chip_gen: v6e
topology: v6e:2x2x1
jax: 0.10.0
libtpu: 0.0.40
codegen_flags: <defaults>
</compile_context>

<pallas_src>
import functools

import jax
import jax.numpy as jnp
from jax.experimental import pallas as pl
from jax.experimental.pallas import tpu as pltpu

EPS = 1e-5
_VMEM_LIMIT = 32 * 1024 * 1024  # explicit scoped-VMEM limit (safe on v5e/v6e/v7x)


# --------------------------------- in-kernel helpers ---------------------------------

def _mm(a, w):
    """(..., K) @ (K, D) on the MXU; operands cast to w.dtype (bf16), f32 accumulation."""
    sh = a.shape
    out = jnp.dot(a.reshape(-1, sh[-1]).astype(w.dtype), w,
                  preferred_element_type=jnp.float32)
    return out.reshape(sh[:-1] + (w.shape[-1],))


def _apply_bn_relu(v, sc_ref, bi_ref):
    """Folded BN (precomputed scale/bias) + ReLU, all in f32 on the VPU."""
    sc = sc_ref[...].reshape(1, 1, 1, -1)
    bi = bi_ref[...].reshape(1, 1, 1, -1)
    return jnp.maximum(v * sc + bi, 0.0)


def _partial_stats(v):
    """Per-tile (sum, sum-of-squares) over (N,H,W), channels stay on lanes."""
    s = jnp.sum(v, axis=(0, 1, 2))
    q = jnp.sum(v * v, axis=(0, 1, 2))
    return jnp.concatenate([s[None, :], q[None, :]], axis=0).reshape(
        (1, 1, 2, v.shape[-1]))


def _shift2d(a, dy, dx):
    """out[0,y,x,:] = a[0,y+dy,x+dx,:] (zero outside); dy, dx are static in {-1,0,1}."""
    H, W = a.shape[1], a.shape[2]
    if dy > 0:
        a = jnp.concatenate([a[:, dy:], jnp.zeros_like(a[:, :dy])], axis=1)
    elif dy < 0:
        a = jnp.concatenate([jnp.zeros_like(a[:, :(-dy)]), a[:, :H + dy]], axis=1)
    if dx > 0:
        a = jnp.concatenate([a[:, :, dx:], jnp.zeros_like(a[:, :, :dx])], axis=2)
    elif dx < 0:
        a = jnp.concatenate([jnp.zeros_like(a[:, :, :(-dx)]), a[:, :, :W + dx]], axis=2)
    return a


# ------------------------------------- kernels ---------------------------------------

def _stage1_kernel(x_ref, sc_ref, bi_ref, w1_ref, h1_ref, st_ref):
    # BN1(folded) + ReLU + 1x1 conv; also emit partial stats of h1 for BN2.
    a1 = _apply_bn_relu(x_ref[...], sc_ref, bi_ref)
    h1 = _mm(a1, w1_ref[...])
    h1_ref[...] = h1
    st_ref[...] = _partial_stats(h1)


def _stage2_kernel(h1_ref, sc_ref, bi_ref, w3_ref, h2_ref, st_ref):
    # BN2(folded) + ReLU + 3x3 conv (stride=1, pad=1) as a single K=9*Cmid im2col matmul.
    a2 = _apply_bn_relu(h1_ref[...], sc_ref, bi_ref)            # (1, H, W, Cmid) f32
    parts = []
    for ky in range(3):
        for kx in range(3):
            parts.append(_shift2d(a2, ky - 1, kx - 1).astype(jnp.bfloat16))
    patches = jnp.concatenate(parts, axis=-1)                    # (1, H, W, 9*Cmid) bf16
    h2 = _mm(patches, w3_ref[...])                               # (1, H, W, Cmid) f32
    h2_ref[...] = h2
    st_ref[...] = _partial_stats(h2)


def _stage3_kernel(has_downsample, h2_ref, x_ref, sc_ref, bi_ref, w4_ref, *rest):
    # BN3(folded) + ReLU + 1x1 conv to Cout4, fused with the residual add.
    if has_downsample:
        ws_ref, o_ref = rest
    else:
        (o_ref,) = rest
    a3 = _apply_bn_relu(h2_ref[...], sc_ref, bi_ref)
    y = _mm(a3, w4_ref[...])
    if has_downsample:
        y = y + _mm(x_ref[...], ws_ref[...])                     # 1x1-conv shortcut
    else:
        y = y + x_ref[...]                                       # identity shortcut
    o_ref[...] = y


# ------------------------------------ host wrapper ------------------------------------

def _pick_block_h(H, W, c_max, budget_bytes=2 * 1024 * 1024):
    best = 1
    for th in range(1, H + 1):
        if H % th == 0 and th * W * c_max * 4 <= budget_bytes:
            best = th
    return best


def _scale_bias(gamma, beta, mean, var):
    var = jnp.maximum(var, 0.0)
    scale = gamma.reshape(-1) * jax.lax.rsqrt(var + EPS)
    bias = beta.reshape(-1) - mean * scale
    return (scale.reshape(1, -1).astype(jnp.float32),
            bias.reshape(1, -1).astype(jnp.float32))


def _compiler_params(semantics):
    return pltpu.CompilerParams(dimension_semantics=semantics,
                                vmem_limit_bytes=_VMEM_LIMIT)


def _resblock_impl(x_nchw, params, stride=1, block_h=None):
    """x_nchw: (N, Cin, H, W) f32; params = (w1, w3, w4, ws|None, g1,b1,g2,b2,g3,b3)."""
    # TODO(synk): stride>1 (strided 3x3 conv + strided 1x1 shortcut) not implemented.
    assert stride == 1, "only stride=1 is implemented in this kernel"
    w1, w3, w4, ws, g1, b1, g2, b2, g3, b3 = params

    x = jnp.transpose(x_nchw, (0, 2, 3, 1)).astype(jnp.float32)   # NCHW -> NHWC
    N, H, W, Cin = x.shape
    Cmid = w1.shape[1]
    Cout4 = w4.shape[1]
    has_ds = ws is not None
    if not has_ds:
        assert Cin == Cout4, "identity shortcut requires in_channel == out_channel*4"

    if block_h is None:
        block_h = _pick_block_h(H, W, max(Cin, Cmid, Cout4))
    assert H % block_h == 0, "block_h must divide H"
    HB = H // block_h
    cnt = N * H * W

    # ---------------- BN1 statistics (exact, from x, single pass) ----------------
    s1 = jnp.sum(x, axis=(0, 1, 2))
    q1 = jnp.sum(x * x, axis=(0, 1, 2))
    m1 = s1 / cnt
    sc1, bi1 = _scale_bias(g1, b1, m1, q1 / cnt - m1 * m1)

    # ---------------- stage 1: BN1+ReLU+1x1 conv, tiled (N, H-bands) ----------------
    w1b = w1.astype(jnp.bfloat16)
    h1, st1 = pl.pallas_call(
        _stage1_kernel,
        grid=(N, HB),
        in_specs=[
            pl.BlockSpec((1, block_h, W, Cin), lambda n, h: (n, h, 0, 0)),
            pl.BlockSpec((1, Cin), lambda n, h: (0, 0)),
            pl.BlockSpec((1, Cin), lambda n, h: (0, 0)),
            pl.BlockSpec((Cin, Cmid), lambda n, h: (0, 0)),
        ],
        out_specs=(
            pl.BlockSpec((1, block_h, W, Cmid), lambda n, h: (n, h, 0, 0)),
            pl.BlockSpec((1, 1, 2, Cmid), lambda n, h: (n, h, 0, 0)),
        ),
        out_shape=(
            jax.ShapeDtypeStruct((N, H, W, Cmid), jnp.float32),
            jax.ShapeDtypeStruct((N, HB, 2, Cmid), jnp.float32),
        ),
        compiler_params=_compiler_params(("parallel", "parallel")),
        cost_estimate=pl.CostEstimate(
            flops=2 * cnt * Cin * Cmid, transcendentals=0,
            bytes_accessed=int(cnt * (Cin + Cmid) * 4 + Cin * Cmid * 2)),
    )(x, sc1, bi1, w1b)

    # ---------------- BN2 statistics from stage-1 partial sums ----------------
    tot1 = jnp.sum(st1, axis=(0, 1))                  # (2, Cmid)
    m2 = tot1[0] / cnt
    sc2, bi2 = _scale_bias(g2, b2, m2, tot1[1] / cnt - m2 * m2)

    # ---------------- stage 2: BN2+ReLU+3x3 conv (im2col), tiled per image ----------------
    w3b = w3.reshape(9 * Cmid, Cmid).astype(jnp.bfloat16)   # (ky,kx,cin) flattened, HWIO order
    h2, st2 = pl.pallas_call(
        _stage2_kernel,
        grid=(N,),
        in_specs=[
            pl.BlockSpec((1, H, W, Cmid), lambda n: (n, 0, 0, 0)),
            pl.BlockSpec((1, Cmid), lambda n: (0, 0)),
            pl.BlockSpec((1, Cmid), lambda n: (0, 0)),
            pl.BlockSpec((9 * Cmid, Cmid), lambda n: (0, 0)),
        ],
        out_specs=(
            pl.BlockSpec((1, H, W, Cmid), lambda n: (n, 0, 0, 0)),
            pl.BlockSpec((1, 1, 2, Cmid), lambda n: (n, 0, 0, 0)),
        ),
        out_shape=(
            jax.ShapeDtypeStruct((N, H, W, Cmid), jnp.float32),
            jax.ShapeDtypeStruct((N, 1, 2, Cmid), jnp.float32),
        ),
        compiler_params=_compiler_params(("parallel",)),
        cost_estimate=pl.CostEstimate(
            flops=2 * cnt * 9 * Cmid * Cmid, transcendentals=0,
            bytes_accessed=int(2 * cnt * Cmid * 4 + 9 * Cmid * Cmid * 2)),
    )(h1, sc2, bi2, w3b)

    # ---------------- BN3 statistics from stage-2 partial sums ----------------
    tot2 = jnp.sum(st2, axis=(0, 1))
    m3 = tot2[0] / cnt
    sc3, bi3 = _scale_bias(g3, b3, m3, tot2[1] / cnt - m3 * m3)

    # ---------------- stage 3: BN3+ReLU+1x1 conv + residual, tiled (N, H-bands) ----------------
    w4b = w4.astype(jnp.bfloat16)
    ins = [h2, x, sc3, bi3, w4b]
    in_specs = [
        pl.BlockSpec((1, block_h, W, Cmid), lambda n, h: (n, h, 0, 0)),
        pl.BlockSpec((1, block_h, W, Cin), lambda n, h: (n, h, 0, 0)),
        pl.BlockSpec((1, Cmid), lambda n, h: (0, 0)),
        pl.BlockSpec((1, Cmid), lambda n, h: (0, 0)),
        pl.BlockSpec((Cmid, Cout4), lambda n, h: (0, 0)),
    ]
    flops3 = 2 * cnt * Cmid * Cout4
    bytes3 = cnt * (Cmid + Cin + Cout4) * 4 + Cmid * Cout4 * 2
    if has_ds:
        ins.append(ws.astype(jnp.bfloat16))
        in_specs.append(pl.BlockSpec((Cin, Cout4), lambda n, h: (0, 0)))
        flops3 += 2 * cnt * Cin * Cout4
        bytes3 += Cin * Cout4 * 2

    out = pl.pallas_call(
        functools.partial(_stage3_kernel, has_ds),
        grid=(N, HB),
        in_specs=in_specs,
        out_specs=pl.BlockSpec((1, block_h, W, Cout4), lambda n, h: (n, h, 0, 0)),
        out_shape=jax.ShapeDtypeStruct((N, H, W, Cout4), jnp.float32),
        compiler_params=_compiler_params(("parallel", "parallel")),
        cost_estimate=pl.CostEstimate(flops=int(flops3), transcendentals=0,
                                      bytes_accessed=int(bytes3)),
    )(*ins)

    return jnp.transpose(out, (0, 3, 1, 2))                      # NHWC -> NCHW


resblock_bottleneck = jax.jit(_resblock_impl, static_argnames=("stride", "block_h"))


# ------------------------- pure-JAX reference (module semantics) -------------------------

def _reference(x_nchw, params):
    w1, w3, w4, ws, g1, b1, g2, b2, g3, b3 = params
    x = jnp.transpose(x_nchw, (0, 2, 3, 1)).astype(jnp.float32)
    hp = jax.lax.Precision.HIGHEST

    def bn_relu(v, g, b):
        mean = v.mean((0, 1, 2), keepdims=True)
        var = jnp.square(v - mean).mean((0, 1, 2), keepdims=True)
        y = (v - mean) / jnp.sqrt(var + EPS) * g.reshape(1, 1, 1, -1) + b.reshape(1, 1, 1, -1)
        return jnp.maximum(y, 0.0)

    a1 = bn_relu(x, g1, b1)
    h1 = jnp.einsum('nhwc,cd->nhwd', a1, w1, precision=hp)
    a2 = bn_relu(h1, g2, b2)
    h2 = jax.lax.conv_general_dilated(
        a2, w3, window_strides=(1, 1), padding='SAME',
        dimension_numbers=('NHWC', 'HWIO', 'NHWC'), precision=hp)
    a3 = bn_relu(h2, g3, b3)
    h3 = jnp.einsum('nhwc,cd->nhwd', a3, w4, precision=hp)
    sc = x if ws is None else jnp.einsum('nhwc,cd->nhwd', x, ws, precision=hp)
    return jnp.transpose(h3 + sc, (0, 3, 1, 2))


def _make_params(key, Cin, Cmid, Cout4, with_ws):
    ks = jax.random.split(key, 10)
    w1 = 0.2 * jax.random.normal(ks[0], (Cin, Cmid), jnp.float32)          # 1x1 conv
    w3 = 0.2 * jax.random.normal(ks[1], (3, 3, Cmid, Cmid), jnp.float32)   # 3x3 conv (HWIO)
    w4 = 0.2 * jax.random.normal(ks[2], (Cmid, Cout4), jnp.float32)        # 1x1 conv
    ws = 0.2 * jax.random.normal(ks[3], (Cin, Cout4), jnp.float32) if with_ws else None
    g1 = 1.0 + 0.1 * jax.random.normal(ks[4], (Cin,), jnp.float32)
    b1 = 0.1 * jax.random.normal(ks[5], (Cin,), jnp.float32)
    g2 = 1.0 + 0.1 * jax.random.normal(ks[6], (Cmid,), jnp.float32)
    b2 = 0.1 * jax.random.normal(ks[7], (Cmid,), jnp.float32)
    g3 = 1.0 + 0.1 * jax.random.normal(ks[8], (Cmid,), jnp.float32)
    b3 = 0.1 * jax.random.normal(ks[9], (Cmid,), jnp.float32)
    return (w1, w3, w4, ws, g1, b1, g2, b2, g3, b3)


def _check(out, ref, atol=5e-2, rtol=5e-2):
    # Tolerance accommodates bf16 MXU operands (f32 accumulation) vs. the f32 reference.
    gap = jnp.max(jnp.abs(out - ref) - (atol + rtol * jnp.abs(ref)))
    assert float(gap) <= 0.0, f"mismatch beyond tolerance by {float(gap)}"


if __name__ == "__main__":
    key = jax.random.PRNGKey(0)
    k1, k2, k3, k4 = jax.random.split(key, 4)

    # Case 1: conv shortcut (in_channel != out_channel*4): in=16, out=8 -> out*4=32.
    N, Cin, H, W, Cmid = 2, 16, 8, 8, 8
    Cout4 = 4 * Cmid
    x = jax.random.normal(k1, (N, Cin, H, W), jnp.float32)
    params = _make_params(k2, Cin, Cmid, Cout4, with_ws=True)
    out = jax.block_until_ready(resblock_bottleneck(x, params, stride=1, block_h=4))
    assert out.shape == (N, Cout4, H, W)
    _check(out, _reference(x, params))

    # Case 2: identity shortcut (in_channel == out_channel*4): in=32, out=8 -> out*4=32.
    Cin2 = Cout4
    x2 = jax.random.normal(k3, (N, Cin2, H, W), jnp.float32)
    params2 = _make_params(k4, Cin2, Cmid, Cout4, with_ws=False)
    out2 = jax.block_until_ready(resblock_bottleneck(x2, params2, stride=1, block_h=4))
    assert out2.shape == (N, Cout4, H, W)
    _check(out2, _reference(x2, params2))

    print("KERNEL_OK")
</pallas_src>

<mosaic_0001>
module attributes {stable_mosaic.version = 11 : i64} {
  func.func @_stage1_kernel(%arg0: i32, %arg1: i32, %arg2: memref<1x4x8x16xf32, #tpu.memory_space<vmem>>, %arg3: memref<1x16xf32, #tpu.memory_space<vmem>>, %arg4: memref<1x16xf32, #tpu.memory_space<vmem>>, %arg5: memref<16x8xbf16, #tpu.memory_space<vmem>>, %arg6: memref<1x4x8x8xf32, #tpu.memory_space<vmem>>, %arg7: memref<1x1x2x8xf32, #tpu.memory_space<vmem>>) attributes {dimension_semantics = [#tpu.dimension_semantics<parallel>, #tpu.dimension_semantics<parallel>], iteration_bounds = array<i64: 2, 2>, scalar_prefetch = 0 : i64, scratch_operands = 0 : i64, tpu.core_type = #tpu.core_type<tc>, window_params = [{transform_indices = @transform_0, window_bounds = array<i64: 1, 4, 8, 16>}, {pipeline_mode = #tpu.pipeline_mode<synchronous>, transform_indices = @transform_1, window_bounds = array<i64: 1, 16>}, {pipeline_mode = #tpu.pipeline_mode<synchronous>, transform_indices = @transform_2, window_bounds = array<i64: 1, 16>}, {pipeline_mode = #tpu.pipeline_mode<synchronous>, transform_indices = @transform_3, window_bounds = array<i64: 16, 8>}, {transform_indices = @transform_4, window_bounds = array<i64: 1, 4, 8, 8>}, {transform_indices = @transform_5, window_bounds = array<i64: 1, 1, 2, 8>}]} {
    %c0 = arith.constant 0 : index
    %c0_0 = arith.constant 0 : index
    %c0_1 = arith.constant 0 : index
    %c0_2 = arith.constant 0 : index
    %0 = vector.load %arg2[%c0, %c0_0, %c0_1, %c0_2] : memref<1x4x8x16xf32, #tpu.memory_space<vmem>>, vector<1x4x8x16xf32>
    %c0_3 = arith.constant 0 : index
    %c0_4 = arith.constant 0 : index
    %1 = vector.load %arg3[%c0_3, %c0_4] : memref<1x16xf32, #tpu.memory_space<vmem>>, vector<1x16xf32>
    %2 = vector.shape_cast %1 : vector<1x16xf32> to vector<1x1x1x16xf32>
    %c0_5 = arith.constant 0 : index
    %c0_6 = arith.constant 0 : index
    %3 = vector.load %arg4[%c0_5, %c0_6] : memref<1x16xf32, #tpu.memory_space<vmem>>, vector<1x16xf32>
    %4 = vector.shape_cast %3 : vector<1x16xf32> to vector<1x1x1x16xf32>
    %5 = vector.broadcast %2 : vector<1x1x1x16xf32> to vector<1x4x8x16xf32>
    %6 = arith.mulf %0, %5 : vector<1x4x8x16xf32>
    %7 = vector.broadcast %4 : vector<1x1x1x16xf32> to vector<1x4x8x16xf32>
    %8 = arith.addf %6, %7 : vector<1x4x8x16xf32>
    %cst = arith.constant 0.000000e+00 : f32
    %9 = vector.broadcast %cst : f32 to vector<1x4x8x16xf32>
    %10 = arith.maximumf %8, %9 : vector<1x4x8x16xf32>
    %c0_7 = arith.constant 0 : index
    %c0_8 = arith.constant 0 : index
    %11 = vector.load %arg5[%c0_7, %c0_8] : memref<16x8xbf16, #tpu.memory_space<vmem>>, vector<16x8xbf16>
    %12 = vector.shape_cast %10 : vector<1x4x8x16xf32> to vector<32x16xf32>
    %13 = arith.truncf %12 : vector<32x16xf32> to vector<32x16xbf16>
    %cst_9 = arith.constant dense<0.000000e+00> : vector<32x8xf32>
    %14 = tpu.matmul %13, %11, %cst_9 {dimension_numbers = #tpu.dot_dimension_numbers<[1], [0], [0], [1], [0, 0, 1, 1], [], []>} : vector<32x16xbf16>, vector<16x8xbf16>, vector<32x8xf32> -> vector<32x8xf32>
    %15 = vector.shape_cast %14 : vector<32x8xf32> to vector<1x4x8x8xf32>
    %c0_10 = arith.constant 0 : index
    %c0_11 = arith.constant 0 : index
    %c0_12 = arith.constant 0 : index
    %c0_13 = arith.constant 0 : index
    %16 = vector.load %arg6[%c0_10, %c0_11, %c0_12, %c0_13] : memref<1x4x8x8xf32, #tpu.memory_space<vmem>>, vector<1x4x8x8xf32>
    tpu.vector_store %arg6[%c0_10, %c0_11, %c0_12, %c0_13], %15 {strides = array<i32>} : memref<1x4x8x8xf32, #tpu.memory_space<vmem>>, vector<1x4x8x8xf32>,
    %cst_14 = arith.constant dense<0.000000e+00> : vector<8xf32>
    %17 = vector.multi_reduction <add>, %15, %cst_14 [0, 1, 2] : vector<1x4x8x8xf32> to vector<8xf32>
    %18 = arith.mulf %15, %15 : vector<1x4x8x8xf32>
    %cst_15 = arith.constant dense<0.000000e+00> : vector<8xf32>
    %19 = vector.multi_reduction <add>, %18, %cst_15 [0, 1, 2] : vector<1x4x8x8xf32> to vector<8xf32>
    %20 = vector.shape_cast %17 : vector<8xf32> to vector<1x8xf32>
    %21 = vector.shape_cast %19 : vector<8xf32> to vector<1x8xf32>
    %22 = tpu.concatenate %20, %21 in 0 : vector<1x8xf32>, vector<1x8xf32> -> vector<2x8xf32>
    %23 = vector.shape_cast %22 : vector<2x8xf32> to vector<1x1x2x8xf32>
    %c0_16 = arith.constant 0 : index
    %c0_17 = arith.constant 0 : index
    %c0_18 = arith.constant 0 : index
    %c0_19 = arith.constant 0 : index
    %24 = vector.load %arg7[%c0_16, %c0_17, %c0_18, %c0_19] : memref<1x1x2x8xf32, #tpu.memory_space<vmem>>, vector<1x1x2x8xf32>
    tpu.vector_store %arg7[%c0_16, %c0_17, %c0_18, %c0_19], %23 {strides = array<i32>} : memref<1x1x2x8xf32, #tpu.memory_space<vmem>>, vector<1x1x2x8xf32>,
    return
  }
  func.func @transform_0(%arg0: i32, %arg1: i32) -> (i32, i32, i32, i32) {
    %c0_i32 = arith.constant 0 : i32
    %c0_i32_0 = arith.constant 0 : i32
    %c0_i32_1 = arith.constant 0 : i32
    return %arg0, %arg1, %c0_i32, %c0_i32_0 : i32, i32, i32, i32
  }
  func.func @transform_1(%arg0: i32, %arg1: i32) -> (i32, i32) {
    %c0_i32 = arith.constant 0 : i32
    %c0_i32_0 = arith.constant 0 : i32
    %c0_i32_1 = arith.constant 0 : i32
    return %c0_i32, %c0_i32_0 : i32, i32
  }
  func.func @transform_2(%arg0: i32, %arg1: i32) -> (i32, i32) {
    %c0_i32 = arith.constant 0 : i32
    %c0_i32_0 = arith.constant 0 : i32
    %c0_i32_1 = arith.constant 0 : i32
    return %c0_i32, %c0_i32_0 : i32, i32
  }
  func.func @transform_3(%arg0: i32, %arg1: i32) -> (i32, i32) {
    %c0_i32 = arith.constant 0 : i32
    %c0_i32_0 = arith.constant 0 : i32
    %c0_i32_1 = arith.constant 0 : i32
    return %c0_i32, %c0_i32_0 : i32, i32
  }
  func.func @transform_4(%arg0: i32, %arg1: i32) -> (i32, i32, i32, i32) {
    %c0_i32 = arith.constant 0 : i32
    %c0_i32_0 = arith.constant 0 : i32
    %c0_i32_1 = arith.constant 0 : i32
    return %arg0, %arg1, %c0_i32, %c0_i32_0 : i32, i32, i32, i32
  }
  func.func @transform_5(%arg0: i32, %arg1: i32) -> (i32, i32, i32, i32) {
    %c0_i32 = arith.constant 0 : i32
    %c0_i32_0 = arith.constant 0 : i32
    %c0_i32_1 = arith.constant 0 : i32
    return %arg0, %arg1, %c0_i32, %c0_i32_0 : i32, i32, i32, i32
  }
}

module attributes {stable_mosaic.version = 11 : i64} {
  func.func @_stage2_kernel(%arg0: i32, %arg1: memref<1x8x8x8xf32, #tpu.memory_space<vmem>>, %arg2: memref<1x8xf32, #tpu.memory_space<vmem>>, %arg3: memref<1x8xf32, #tpu.memory_space<vmem>>, %arg4: memref<72x8xbf16, #tpu.memory_space<vmem>>, %arg5: memref<1x8x8x8xf32, #tpu.memory_space<vmem>>, %arg6: memref<1x1x2x8xf32, #tpu.memory_space<vmem>>) attributes {dimension_semantics = [#tpu.dimension_semantics<parallel>], iteration_bounds = array<i64: 2>, scalar_prefetch = 0 : i64, scratch_operands = 0 : i64, tpu.core_type = #tpu.core_type<tc>, window_params = [{transform_indices = @transform_0, window_bounds = array<i64: 1, 8, 8, 8>}, {pipeline_mode = #tpu.pipeline_mode<synchronous>, transform_indices = @transform_1, window_bounds = array<i64: 1, 8>}, {pipeline_mode = #tpu.pipeline_mode<synchronous>, transform_indices = @transform_2, window_bounds = array<i64: 1, 8>}, {pipeline_mode = #tpu.pipeline_mode<synchronous>, transform_indices = @transform_3, window_bounds = array<i64: 72, 8>}, {transform_indices = @transform_4, window_bounds = array<i64: 1, 8, 8, 8>}, {transform_indices = @transform_5, window_bounds = array<i64: 1, 1, 2, 8>}]} {
    %c0 = arith.constant 0 : index
    %c0_0 = arith.constant 0 : index
    %c0_1 = arith.constant 0 : index
    %c0_2 = arith.constant 0 : index
    %0 = vector.load %arg1[%c0, %c0_0, %c0_1, %c0_2] : memref<1x8x8x8xf32, #tpu.memory_space<vmem>>, vector<1x8x8x8xf32>
    %c0_3 = arith.constant 0 : index
    %c0_4 = arith.constant 0 : index
    %1 = vector.load %arg2[%c0_3, %c0_4] : memref<1x8xf32, #tpu.memory_space<vmem>>, vector<1x8xf32>
    %2 = vector.shape_cast %1 : vector<1x8xf32> to vector<1x1x1x8xf32>
    %c0_5 = arith.constant 0 : index
    %c0_6 = arith.constant 0 : index
    %3 = vector.load %arg3[%c0_5, %c0_6] : memref<1x8xf32, #tpu.memory_space<vmem>>, vector<1x8xf32>
    %4 = vector.shape_cast %3 : vector<1x8xf32> to vector<1x1x1x8xf32>
    %5 = vector.broadcast %2 : vector<1x1x1x8xf32> to vector<1x8x8x8xf32>
    %6 = arith.mulf %0, %5 : vector<1x8x8x8xf32>
    %7 = vector.broadcast %4 : vector<1x1x1x8xf32> to vector<1x8x8x8xf32>
    %8 = arith.addf %6, %7 : vector<1x8x8x8xf32>
    %cst = arith.constant 0.000000e+00 : f32
    %9 = vector.broadcast %cst : f32 to vector<1x8x8x8xf32>
    %10 = arith.maximumf %8, %9 : vector<1x8x8x8xf32>
    %cst_7 = arith.constant 0.000000e+00 : f32
    %11 = vector.broadcast %cst_7 : f32 to vector<1x1x8x8xf32>
    %12 = vector.extract_strided_slice %10 {offsets = [0, 0, 0, 0], sizes = [1, 7, 8, 8], strides = [1, 1, 1, 1]} : vector<1x8x8x8xf32> to vector<1x7x8x8xf32>
    %13 = tpu.concatenate %11, %12 in 1 : vector<1x1x8x8xf32>, vector<1x7x8x8xf32> -> vector<1x8x8x8xf32>
    %cst_8 = arith.constant 0.000000e+00 : f32
    %14 = vector.broadcast %cst_8 : f32 to vector<1x8x1x8xf32>
    %15 = vector.extract_strided_slice %13 {offsets = [0, 0, 0, 0], sizes = [1, 8, 7, 8], strides = [1, 1, 1, 1]} : vector<1x8x8x8xf32> to vector<1x8x7x8xf32>
    %16 = tpu.concatenate %14, %15 in 2 : vector<1x8x1x8xf32>, vector<1x8x7x8xf32> -> vector<1x8x8x8xf32>
    %17 = arith.truncf %16 : vector<1x8x8x8xf32> to vector<1x8x8x8xbf16>
    %cst_9 = arith.constant 0.000000e+00 : f32
    %18 = vector.broadcast %cst_9 : f32 to vector<1x1x8x8xf32>
    %19 = vector.extract_strided_slice %10 {offsets = [0, 0, 0, 0], sizes = [1, 7, 8, 8], strides = [1, 1, 1, 1]} : vector<1x8x8x8xf32> to vector<1x7x8x8xf32>
    %20 = tpu.concatenate %18, %19 in 1 : vector<1x1x8x8xf32>, vector<1x7x8x8xf32> -> vector<1x8x8x8xf32>
    %21 = arith.truncf %20 : vector<1x8x8x8xf32> to vector<1x8x8x8xbf16>
    %cst_10 = arith.constant 0.000000e+00 : f32
    %22 = vector.broadcast %cst_10 : f32 to vector<1x1x8x8xf32>
    %23 = vector.extract_strided_slice %10 {offsets = [0, 0, 0, 0], sizes = [1, 7, 8, 8], strides = [1, 1, 1, 1]} : vector<1x8x8x8xf32> to vector<1x7x8x8xf32>
    %24 = tpu.concatenate %22, %23 in 1 : vector<1x1x8x8xf32>, vector<1x7x8x8xf32> -> vector<1x8x8x8xf32>
    %25 = vector.extract_strided_slice %24 {offsets = [0, 0, 1, 0], sizes = [1, 8, 7, 8], strides = [1, 1, 1, 1]} : vector<1x8x8x8xf32> to vector<1x8x7x8xf32>
    %cst_11 = arith.constant 0.000000e+00 : f32
    %26 = vector.broadcast %cst_11 : f32 to vector<1x8x1x8xf32>
    %27 = tpu.concatenate %25, %26 in 2 : vector<1x8x7x8xf32>, vector<1x8x1x8xf32> -> vector<1x8x8x8xf32>
    %28 = arith.truncf %27 : vector<1x8x8x8xf32> to vector<1x8x8x8xbf16>
    %cst_12 = arith.constant 0.000000e+00 : f32
    %29 = vector.broadcast %cst_12 : f32 to vector<1x8x1x8xf32>
    %30 = vector.extract_strided_slice %10 {offsets = [0, 0, 0, 0], sizes = [1, 8, 7, 8], strides = [1, 1, 1, 1]} : vector<1x8x8x8xf32> to vector<1x8x7x8xf32>
    %31 = tpu.concatenate %29, %30 in 2 : vector<1x8x1x8xf32>, vector<1x8x7x8xf32> -> vector<1x8x8x8xf32>
    %32 = arith.truncf %31 : vector<1x8x8x8xf32> to vector<1x8x8x8xbf16>
    %33 = arith.truncf %10 : vector<1x8x8x8xf32> to vector<1x8x8x8xbf16>
    %34 = vector.extract_strided_slice %10 {offsets = [0, 0, 1, 0], sizes = [1, 8, 7, 8], strides = [1, 1, 1, 1]} : vector<1x8x8x8xf32> to vector<1x8x7x8xf32>
    %cst_13 = arith.constant 0.000000e+00 : f32
    %35 = vector.broadcast %cst_13 : f32 to vector<1x8x1x8xf32>
    %36 = tpu.concatenate %34, %35 in 2 : vector<1x8x7x8xf32>, vector<1x8x1x8xf32> -> vector<1x8x8x8xf32>
    %37 = arith.truncf %36 : vector<1x8x8x8xf32> to vector<1x8x8x8xbf16>
    %38 = vector.extract_strided_slice %10 {offsets = [0, 1, 0, 0], sizes = [1, 7, 8, 8], strides = [1, 1, 1, 1]} : vector<1x8x8x8xf32> to vector<1x7x8x8xf32>
    %cst_14 = arith.constant 0.000000e+00 : f32
    %39 = vector.broadcast %cst_14 : f32 to vector<1x1x8x8xf32>
    %40 = tpu.concatenate %38, %39 in 1 : vector<1x7x8x8xf32>, vector<1x1x8x8xf32> -> vector<1x8x8x8xf32>
    %cst_15 = arith.constant 0.000000e+00 : f32
    %41 = vector.broadcast %cst_15 : f32 to vector<1x8x1x8xf32>
    %42 = vector.extract_strided_slice %40 {offsets = [0, 0, 0, 0], sizes = [1, 8, 7, 8], strides = [1, 1, 1, 1]} : vector<1x8x8x8xf32> to vector<1x8x7x8xf32>
    %43 = tpu.concatenate %41, %42 in 2 : vector<1x8x1x8xf32>, vector<1x8x7x8xf32> -> vector<1x8x8x8xf32>
    %44 = arith.truncf %43 : vector<1x8x8x8xf32> to vector<1x8x8x8xbf16>
    %45 = vector.extract_strided_slice %10 {offsets = [0, 1, 0, 0], sizes = [1, 7, 8, 8], strides = [1, 1, 1, 1]} : vector<1x8x8x8xf32> to vector<1x7x8x8xf32>
    %cst_16 = arith.constant 0.000000e+00 : f32
    %46 = vector.broadcast %cst_16 : f32 to vector<1x1x8x8xf32>
    %47 = tpu.concatenate %45, %46 in 1 : vector<1x7x8x8xf32>, vector<1x1x8x8xf32> -> vector<1x8x8x8xf32>
    %48 = arith.truncf %47 : vector<1x8x8x8xf32> to vector<1x8x8x8xbf16>
    %49 = vector.extract_strided_slice %10 {offsets = [0, 1, 0, 0], sizes = [1, 7, 8, 8], strides = [1, 1, 1, 1]} : vector<1x8x8x8xf32> to vector<1x7x8x8xf32>
    %cst_17 = arith.constant 0.000000e+00 : f32
    %50 = vector.broadcast %cst_17 : f32 to vector<1x1x8x8xf32>
    %51 = tpu.concatenate %49, %50 in 1 : vector<1x7x8x8xf32>, vector<1x1x8x8xf32> -> vector<1x8x8x8xf32>
    %52 = vector.extract_strided_slice %51 {offsets = [0, 0, 1, 0], sizes = [1, 8, 7, 8], strides = [1, 1, 1, 1]} : vector<1x8x8x8xf32> to vector<1x8x7x8xf32>
    %cst_18 = arith.constant 0.000000e+00 : f32
    %53 = vector.broadcast %cst_18 : f32 to vector<1x8x1x8xf32>
    %54 = tpu.concatenate %52, %53 in 2 : vector<1x8x7x8xf32>, vector<1x8x1x8xf32> -> vector<1x8x8x8xf32>
    %55 = arith.truncf %54 : vector<1x8x8x8xf32> to vector<1x8x8x8xbf16>
    %56 = tpu.concatenate %17, %21, %28, %32, %33, %37, %44, %48, %55 in 3 : vector<1x8x8x8xbf16>, vector<1x8x8x8xbf16>, vector<1x8x8x8xbf16>, vector<1x8x8x8xbf16>, vector<1x8x8x8xbf16>, vector<1x8x8x8xbf16>, vector<1x8x8x8xbf16>, vector<1x8x8x8xbf16>, vector<1x8x8x8xbf16> -> vector<1x8x8x72xbf16>
    %c0_19 = arith.constant 0 : index
    %c0_20 = arith.constant 0 : index
    %57 = vector.load %arg4[%c0_19, %c0_20] : memref<72x8xbf16, #tpu.memory_space<vmem>>, vector<72x8xbf16>
    %58 = vector.shape_cast %56 : vector<1x8x8x72xbf16> to vector<64x72xbf16>
    %cst_21 = arith.constant dense<0.000000e+00> : vector<64x8xf32>
    %59 = tpu.matmul %58, %57, %cst_21 {dimension_numbers = #tpu.dot_dimension_numbers<[1], [0], [0], [1], [0, 0, 1, 1], [], []>} : vector<64x72xbf16>, vector<72x8xbf16>, vector<64x8xf32> -> vector<64x8xf32>
    %60 = vector.shape_cast %59 : vector<64x8xf32> to vector<1x8x8x8xf32>
    %c0_22 = arith.constant 0 : index
    %c0_23 = arith.constant 0 : index
    %c0_24 = arith.constant 0 : index
    %c0_25 = arith.constant 0 : index
    %61 = vector.load %arg5[%c0_22, %c0_23, %c0_24, %c0_25] : memref<1x8x8x8xf32, #tpu.memory_space<vmem>>, vector<1x8x8x8xf32>
    tpu.vector_store %arg5[%c0_22, %c0_23, %c0_24, %c0_25], %60 {strides = array<i32>} : memref<1x8x8x8xf32, #tpu.memory_space<vmem>>, vector<1x8x8x8xf32>,
    %cst_26 = arith.constant dense<0.000000e+00> : vector<8xf32>
    %62 = vector.multi_reduction <add>, %60, %cst_26 [0, 1, 2] : vector<1x8x8x8xf32> to vector<8xf32>
    %63 = arith.mulf %60, %60 : vector<1x8x8x8xf32>
    %cst_27 = arith.constant dense<0.000000e+00> : vector<8xf32>
    %64 = vector.multi_reduction <add>, %63, %cst_27 [0, 1, 2] : vector<1x8x8x8xf32> to vector<8xf32>
    %65 = vector.shape_cast %62 : vector<8xf32> to vector<1x8xf32>
    %66 = vector.shape_cast %64 : vector<8xf32> to vector<1x8xf32>
    %67 = tpu.concatenate %65, %66 in 0 : vector<1x8xf32>, vector<1x8xf32> -> vector<2x8xf32>
    %68 = vector.shape_cast %67 : vector<2x8xf32> to vector<1x1x2x8xf32>
    %c0_28 = arith.constant 0 : index
    %c0_29 = arith.constant 0 : index
    %c0_30 = arith.constant 0 : index
    %c0_31 = arith.constant 0 : index
    %69 = vector.load %arg6[%c0_28, %c0_29, %c0_30, %c0_31] : memref<1x1x2x8xf32, #tpu.memory_space<vmem>>, vector<1x1x2x8xf32>
    tpu.vector_store %arg6[%c0_28, %c0_29, %c0_30, %c0_31], %68 {strides = array<i32>} : memref<1x1x2x8xf32, #tpu.memory_space<vmem>>, vector<1x1x2x8xf32>,
    return
  }
  func.func @transform_0(%arg0: i32) -> (i32, i32, i32, i32) {
    %c0_i32 = arith.constant 0 : i32
    %c0_i32_0 = arith.constant 0 : i32
    %c0_i32_1 = arith.constant 0 : i32
    %c0_i32_2 = arith.constant 0 : i32
    return %arg0, %c0_i32, %c0_i32_0, %c0_i32_1 : i32, i32, i32, i32
  }
  func.func @transform_1(%arg0: i32) -> (i32, i32) {
    %c0_i32 = arith.constant 0 : i32
    %c0_i32_0 = arith.constant 0 : i32
    %c0_i32_1 = arith.constant 0 : i32
    return %c0_i32, %c0_i32_0 : i32, i32
  }
  func.func @transform_2(%arg0: i32) -> (i32, i32) {
    %c0_i32 = arith.constant 0 : i32
    %c0_i32_0 = arith.constant 0 : i32
    %c0_i32_1 = arith.constant 0 : i32
    return %c0_i32, %c0_i32_0 : i32, i32
  }
  func.func @transform_3(%arg0: i32) -> (i32, i32) {
    %c0_i32 = arith.constant 0 : i32
    %c0_i32_0 = arith.constant 0 : i32
    %c0_i32_1 = arith.constant 0 : i32
    return %c0_i32, %c0_i32_0 : i32, i32
  }
  func.func @transform_4(%arg0: i32) -> (i32, i32, i32, i32) {
    %c0_i32 = arith.constant 0 : i32
    %c0_i32_0 = arith.constant 0 : i32
    %c0_i32_1 = arith.constant 0 : i32
    %c0_i32_2 = arith.constant 0 : i32
    return %arg0, %c0_i32, %c0_i32_0, %c0_i32_1 : i32, i32, i32, i32
  }
  func.func @transform_5(%arg0: i32) -> (i32, i32, i32, i32) {
    %c0_i32 = arith.constant 0 : i32
    %c0_i32_0 = arith.constant 0 : i32
    %c0_i32_1 = arith.constant 0 : i32
    %c0_i32_2 = arith.constant 0 : i32
    return %arg0, %c0_i32, %c0_i32_0, %c0_i32_1 : i32, i32, i32, i32
  }
}

module attributes {stable_mosaic.version = 11 : i64} {
  func.func @_stage3_kernel(%arg0: i32, %arg1: i32, %arg2: memref<1x4x8x8xf32, #tpu.memory_space<vmem>>, %arg3: memref<1x4x8x16xf32, #tpu.memory_space<vmem>>, %arg4: memref<1x8xf32, #tpu.memory_space<vmem>>, %arg5: memref<1x8xf32, #tpu.memory_space<vmem>>, %arg6: memref<8x32xbf16, #tpu.memory_space<vmem>>, %arg7: memref<16x32xbf16, #tpu.memory_space<vmem>>, %arg8: memref<1x4x8x32xf32, #tpu.memory_space<vmem>>) attributes {dimension_semantics = [#tpu.dimension_semantics<parallel>, #tpu.dimension_semantics<parallel>], iteration_bounds = array<i64: 2, 2>, scalar_prefetch = 0 : i64, scratch_operands = 0 : i64, tpu.core_type = #tpu.core_type<tc>, window_params = [{transform_indices = @transform_0, window_bounds = array<i64: 1, 4, 8, 8>}, {transform_indices = @transform_1, window_bounds = array<i64: 1, 4, 8, 16>}, {pipeline_mode = #tpu.pipeline_mode<synchronous>, transform_indices = @transform_2, window_bounds = array<i64: 1, 8>}, {pipeline_mode = #tpu.pipeline_mode<synchronous>, transform_indices = @transform_3, window_bounds = array<i64: 1, 8>}, {pipeline_mode = #tpu.pipeline_mode<synchronous>, transform_indices = @transform_4, window_bounds = array<i64: 8, 32>}, {pipeline_mode = #tpu.pipeline_mode<synchronous>, transform_indices = @transform_5, window_bounds = array<i64: 16, 32>}, {transform_indices = @transform_6, window_bounds = array<i64: 1, 4, 8, 32>}]} {
    %c0 = arith.constant 0 : index
    %c0_0 = arith.constant 0 : index
    %c0_1 = arith.constant 0 : index
    %c0_2 = arith.constant 0 : index
    %0 = vector.load %arg2[%c0, %c0_0, %c0_1, %c0_2] : memref<1x4x8x8xf32, #tpu.memory_space<vmem>>, vector<1x4x8x8xf32>
    %c0_3 = arith.constant 0 : index
    %c0_4 = arith.constant 0 : index
    %1 = vector.load %arg4[%c0_3, %c0_4] : memref<1x8xf32, #tpu.memory_space<vmem>>, vector<1x8xf32>
    %2 = vector.shape_cast %1 : vector<1x8xf32> to vector<1x1x1x8xf32>
    %c0_5 = arith.constant 0 : index
    %c0_6 = arith.constant 0 : index
    %3 = vector.load %arg5[%c0_5, %c0_6] : memref<1x8xf32, #tpu.memory_space<vmem>>, vector<1x8xf32>
    %4 = vector.shape_cast %3 : vector<1x8xf32> to vector<1x1x1x8xf32>
    %5 = vector.broadcast %2 : vector<1x1x1x8xf32> to vector<1x4x8x8xf32>
    %6 = arith.mulf %0, %5 : vector<1x4x8x8xf32>
    %7 = vector.broadcast %4 : vector<1x1x1x8xf32> to vector<1x4x8x8xf32>
    %8 = arith.addf %6, %7 : vector<1x4x8x8xf32>
    %cst = arith.constant 0.000000e+00 : f32
    %9 = vector.broadcast %cst : f32 to vector<1x4x8x8xf32>
    %10 = arith.maximumf %8, %9 : vector<1x4x8x8xf32>
    %c0_7 = arith.constant 0 : index
    %c0_8 = arith.constant 0 : index
    %11 = vector.load %arg6[%c0_7, %c0_8] : memref<8x32xbf16, #tpu.memory_space<vmem>>, vector<8x32xbf16>
    %12 = vector.shape_cast %10 : vector<1x4x8x8xf32> to vector<32x8xf32>
    %13 = arith.truncf %12 : vector<32x8xf32> to vector<32x8xbf16>
    %cst_9 = arith.constant dense<0.000000e+00> : vector<32x32xf32>
    %14 = tpu.matmul %13, %11, %cst_9 {dimension_numbers = #tpu.dot_dimension_numbers<[1], [0], [0], [1], [0, 0, 1, 1], [], []>} : vector<32x8xbf16>, vector<8x32xbf16>, vector<32x32xf32> -> vector<32x32xf32>
    %15 = vector.shape_cast %14 : vector<32x32xf32> to vector<1x4x8x32xf32>
    %c0_10 = arith.constant 0 : index
    %c0_11 = arith.constant 0 : index
    %c0_12 = arith.constant 0 : index
    %c0_13 = arith.constant 0 : index
    %16 = vector.load %arg3[%c0_10, %c0_11, %c0_12, %c0_13] : memref<1x4x8x16xf32, #tpu.memory_space<vmem>>, vector<1x4x8x16xf32>
    %c0_14 = arith.constant 0 : index
    %c0_15 = arith.constant 0 : index
    %17 = vector.load %arg7[%c0_14, %c0_15] : memref<16x32xbf16, #tpu.memory_space<vmem>>, vector<16x32xbf16>
    %18 = vector.shape_cast %16 : vector<1x4x8x16xf32> to vector<32x16xf32>
    %19 = arith.truncf %18 : vector<32x16xf32> to vector<32x16xbf16>
    %cst_16 = arith.constant dense<0.000000e+00> : vector<32x32xf32>
    %20 = tpu.matmul %19, %17, %cst_16 {dimension_numbers = #tpu.dot_dimension_numbers<[1], [0], [0], [1], [0, 0, 1, 1], [], []>} : vector<32x16xbf16>, vector<16x32xbf16>, vector<32x32xf32> -> vector<32x32xf32>
    %21 = vector.shape_cast %20 : vector<32x32xf32> to vector<1x4x8x32xf32>
    %22 = arith.addf %15, %21 : vector<1x4x8x32xf32>
    %c0_17 = arith.constant 0 : index
    %c0_18 = arith.constant 0 : index
    %c0_19 = arith.constant 0 : index
    %c0_20 = arith.constant 0 : index
    %23 = vector.load %arg8[%c0_17, %c0_18, %c0_19, %c0_20] : memref<1x4x8x32xf32, #tpu.memory_space<vmem>>, vector<1x4x8x32xf32>
    tpu.vector_store %arg8[%c0_17, %c0_18, %c0_19, %c0_20], %22 {strides = array<i32>} : memref<1x4x8x32xf32, #tpu.memory_space<vmem>>, vector<1x4x8x32xf32>,
    return
  }
  func.func @transform_0(%arg0: i32, %arg1: i32) -> (i32, i32, i32, i32) {
    %c0_i32 = arith.constant 0 : i32
    %c0_i32_0 = arith.constant 0 : i32
    %c0_i32_1 = arith.constant 0 : i32
    return %arg0, %arg1, %c0_i32, %c0_i32_0 : i32, i32, i32, i32
  }
  func.func @transform_1(%arg0: i32, %arg1: i32) -> (i32, i32, i32, i32) {
    %c0_i32 = arith.constant 0 : i32
    %c0_i32_0 = arith.constant 0 : i32
    %c0_i32_1 = arith.constant 0 : i32
    return %arg0, %arg1, %c0_i32, %c0_i32_0 : i32, i32, i32, i32
  }
  func.func @transform_2(%arg0: i32, %arg1: i32) -> (i32, i32) {
    %c0_i32 = arith.constant 0 : i32
    %c0_i32_0 = arith.constant 0 : i32
    %c0_i32_1 = arith.constant 0 : i32
    return %c0_i32, %c0_i32_0 : i32, i32
  }
  func.func @transform_3(%arg0: i32, %arg1: i32) -> (i32, i32) {
    %c0_i32 = arith.constant 0 : i32
    %c0_i32_0 = arith.constant 0 : i32
    %c0_i32_1 = arith.constant 0 : i32
    return %c0_i32, %c0_i32_0 : i32, i32
  }
  func.func @transform_4(%arg0: i32, %arg1: i32) -> (i32, i32) {
    %c0_i32 = arith.constant 0 : i32
    %c0_i32_0 = arith.constant 0 : i32
    %c0_i32_1 = arith.constant 0 : i32
    return %c0_i32, %c0_i32_0 : i32, i32
  }
  func.func @transform_5(%arg0: i32, %arg1: i32) -> (i32, i32) {
    %c0_i32 = arith.constant 0 : i32
    %c0_i32_0 = arith.constant 0 : i32
    %c0_i32_1 = arith.constant 0 : i32
    return %c0_i32, %c0_i32_0 : i32, i32
  }
  func.func @transform_6(%arg0: i32, %arg1: i32) -> (i32, i32, i32, i32) {
    %c0_i32 = arith.constant 0 : i32
    %c0_i32_0 = arith.constant 0 : i32
    %c0_i32_1 = arith.constant 0 : i32
    return %arg0, %arg1, %c0_i32, %c0_i32_0 : i32, i32, i32, i32
  }
}

</mosaic_0001>

<llo_original>
// kernel: _resblock_impl.5
$region0: #{_resblock_impl.5}
  #allocation0 [shape = 'u32[]', space=smem, size = 0x4, offset = 0x4, fixed_abs, tag = 'smem constant byte address 0x4 - core index']
  #allocation1 [shape = 'u32[144,128]{1,0:T(1,128)}', space=vmem, size = 0x12000, scoped, tag = 'internal scratch']
  %s0 = inlined_call_operand.vmem [shape: f32[2,8,8,8], index: 0, kind: input, shape index: {}]
  %s1 = inlined_call_operand.vmem [shape: f32[2,8,8,16], index: 1, kind: input, shape index: {}]
  %s2 = inlined_call_operand.vmem [shape: f32[1,8], index: 2, kind: input, shape index: {}]
  %s3 = inlined_call_operand.vmem [shape: f32[1,8], index: 3, kind: input, shape index: {}]
  %s4 = inlined_call_operand.vmem [shape: bf16[8,32], index: 4, kind: input, shape index: {}]
  %s5 = inlined_call_operand.vmem [shape: bf16[16,32], index: 5, kind: input, shape index: {}]
  %s6 = inlined_call_operand.hbm [shape: f32[2,8,8,32], index: 6, kind: output, shape index: {}]
  %s7 = sld [smem:[#allocation0]]
  $region57: #{_resblock_impl.5} parent=0
    _
  %s9 = ssub.s32 1, %s7
  %s10 = scalar_select 0, %s9, %s7
  $region1: #{_resblock_impl.5} parent=0
    #allocation2 [shape = 'u8[32768]{0}', space=vmem, size = 0x8000, scoped, tag = 'output window, operand 0']
    #allocation3 [shape = 's32[2]{0}', space=sflag, size = 0x8, scoped, tag = 'scoped memory for _resblock_impl.5']
    %11 = vsyncpa [#allocation3], 0
    %s12 = scalar_lea.sflag [#allocation3], 1
    %13 = vsyncpa %s12, 0
    loop: start=0, step=1, limit=6
    $region2: #{_resblock_impl.5} parent=1 // loop_pre_header
      _
    $region3: #{_resblock_impl.5} parent=1 // loop_header
      %s15 = sphi 0, %s19
      %p16 = scmp.ge.s32.totalorder %s15, 6
      %s22 = sphi 0, %s34
      %s23 = sphi 0, %s30
      %s24 = sphi 0, %s22
      %s25 = sphi 0, %s23
      %s26 = sphi 0, %s24
      %s27 = sphi 0, %s25
      %s39 = sphi 0, %s41
      %s42 = sphi 0, %s39
      %s43 = sphi 0, %s42
      %s59 = sphi 0, %s43
      %s67 = sphi 0, %s69
      %s70 = sphi 0, %s67
      %s71 = sphi 0, %s70
      %s87 = sphi 0, %s71
      %s91 = sphi 0, %s91
      %s93 = sphi 0, %s91
      %s94 = sphi 0, %s93
      %s108 = sphi 0, %s94
      %s112 = sphi 0, %s112
      %s114 = sphi 0, %s112
      %s115 = sphi 0, %s114
      %s129 = sphi 0, %s115
      %s133 = sphi 0, %s133
      %s135 = sphi 0, %s133
      %s136 = sphi 0, %s135
      %s150 = sphi 0, %s136
      %s154 = sphi 0, %s154
      %s156 = sphi 0, %s154
      %s157 = sphi 0, %s156
      %s171 = sphi 0, %s157
      %s179 = sphi 0, %s181
      %s182 = sphi 0, %s179
      %s183 = sphi 0, %s182
      %s199 = sphi 0, %s183
    $region4: #{_resblock_impl.5} parent=1 // loop_header_branch
      %18 = sbr.rel (%p16) target = $region8
    $region5: #{_resblock_impl.5} parent=1 // loop_body
      %s20 = ssub.s32 %s15, 1
      %s21 = ssub.s32 %s15, 2
      %s28 = sadd.s32 1, %s23
      %p29 = scmp.ge.s32.totalorder %s28, 2
      %s30 = scalar_select %p29, 0, %s28
      %s31 = sadd.s32 1, %s22
      %s32 = scalar_select %p29, %s31, %s22
      %p33 = scmp.ge.s32.totalorder %s32, 2
      %s34 = scalar_select %p33, 0, %s32
      %s35 = ssub.s32 %s22, %s34
      %s36 = ssub.s32 %s23, %s30
      %s37 = sor.u32 %s35, %s36
      %p38 = scmp.eq.s32.totalorder %s37, 0
      %s40 = sadd.s32 %s39, 1
      %s41 = scalar_select %p38, %s39, %s40
      %p44 = pneg %p38
      %p45 = scmp.eq.s32.totalorder %s15, 3
      %p46 = por %p44, %p45
      %p47 = scmp.ne.s32.totalorder %s39, %s42
      %p48 = scmp.eq.s32.totalorder %s15, 0
      %p49 = por %p47, %p48
      %p50 = scmp.ne.s32.totalorder %s39, %s42
      %p51 = scmp.eq.s32.totalorder %s20, 3
      %p52 = por %p50, %p51
      %p53 = scmp.ne.s32.totalorder %s42, %s43
      %p54 = scmp.eq.s32.totalorder %s20, 0
      %p55 = por %p53, %p54
      %p56 = scmp.ne.s32.totalorder %s42, %s43
      %p57 = scmp.eq.s32.totalorder %s21, 3
      %p58 = por %p56, %p57
      %p60 = scmp.ne.s32.totalorder %s43, %s59
      %p61 = scmp.eq.s32.totalorder %s21, 0
      %p62 = por %p60, %p61
      %s63 = ssub.s32 %s22, %s34
      %s64 = ssub.s32 %s23, %s30
      %s65 = sor.u32 %s63, %s64
      %p66 = scmp.eq.s32.totalorder %s65, 0
      %s68 = sadd.s32 %s67, 1
      %s69 = scalar_select %p66, %s67, %s68
      %p72 = pneg %p66
      %p73 = scmp.eq.s32.totalorder %s15, 3
      %p74 = por %p72, %p73
      %p75 = scmp.ne.s32.totalorder %s67, %s70
      %p76 = scmp.eq.s32.totalorder %s15, 0
      %p77 = por %p75, %p76
      %p78 = scmp.ne.s32.totalorder %s67, %s70
      %p79 = scmp.eq.s32.totalorder %s20, 3
      %p80 = por %p78, %p79
      %p81 = scmp.ne.s32.totalorder %s70, %s71
      %p82 = scmp.eq.s32.totalorder %s20, 0
      %p83 = por %p81, %p82
      %p84 = scmp.ne.s32.totalorder %s70, %s71
      %p85 = scmp.eq.s32.totalorder %s21, 3
      %p86 = por %p84, %p85
      %p88 = scmp.ne.s32.totalorder %s71, %s87
      %p89 = scmp.eq.s32.totalorder %s21, 0
      %p90 = por %p88, %p89
      %s92 = sadd.s32 %s91, 1
      %p95 = scmp.eq.s32.totalorder %s15, 3
      %p96 = scmp.ne.s32.totalorder %s91, %s93
      %p97 = scmp.eq.s32.totalorder %s15, 0
      %p98 = por %p96, %p97
      %p99 = scmp.ne.s32.totalorder %s91, %s93
      %p100 = scmp.eq.s32.totalorder %s20, 3
      %p101 = por %p99, %p100
      %p102 = scmp.ne.s32.totalorder %s93, %s94
      %p103 = scmp.eq.s32.totalorder %s20, 0
      %p104 = por %p102, %p103
      %p105 = scmp.ne.s32.totalorder %s93, %s94
      %p106 = scmp.eq.s32.totalorder %s21, 3
      %p107 = por %p105, %p106
      %p109 = scmp.ne.s32.totalorder %s94, %s108
      %p110 = scmp.eq.s32.totalorder %s21, 0
      %p111 = por %p109, %p110
      %s113 = sadd.s32 %s112, 1
      %p116 = scmp.eq.s32.totalorder %s15, 3
      %p117 = scmp.ne.s32.totalorder %s112, %s114
      %p118 = scmp.eq.s32.totalorder %s15, 0
      %p119 = por %p117, %p118
      %p120 = scmp.ne.s32.totalorder %s112, %s114
      %p121 = scmp.eq.s32.totalorder %s20, 3
      %p122 = por %p120, %p121
      %p123 = scmp.ne.s32.totalorder %s114, %s115
      %p124 = scmp.eq.s32.totalorder %s20, 0
      %p125 = por %p123, %p124
      %p126 = scmp.ne.s32.totalorder %s114, %s115
      %p127 = scmp.eq.s32.totalorder %s21, 3
      %p128 = por %p126, %p127
      %p130 = scmp.ne.s32.totalorder %s115, %s129
      %p131 = scmp.eq.s32.totalorder %s21, 0
      %p132 = por %p130, %p131
      %s134 = sadd.s32 %s133, 1
      %p137 = scmp.eq.s32.totalorder %s15, 3
      %p138 = scmp.ne.s32.totalorder %s133, %s135
      %p139 = scmp.eq.s32.totalorder %s15, 0
      %p140 = por %p138, %p139
      %p141 = scmp.ne.s32.totalorder %s133, %s135
      %p142 = scmp.eq.s32.totalorder %s20, 3
      %p143 = por %p141, %p142
      %p144 = scmp.ne.s32.totalorder %s135, %s136
      %p145 = scmp.eq.s32.totalorder %s20, 0
      %p146 = por %p144, %p145
      %p147 = scmp.ne.s32.totalorder %s135, %s136
      %p148 = scmp.eq.s32.totalorder %s21, 3
      %p149 = por %p147, %p148
      %p151 = scmp.ne.s32.totalorder %s136, %s150
      %p152 = scmp.eq.s32.totalorder %s21, 0
      %p153 = por %p151, %p152
      %s155 = sadd.s32 %s154, 1
      %p158 = scmp.eq.s32.totalorder %s15, 3
      %p159 = scmp.ne.s32.totalorder %s154, %s156
      %p160 = scmp.eq.s32.totalorder %s15, 0
      %p161 = por %p159, %p160
      %p162 = scmp.ne.s32.totalorder %s154, %s156
      %p163 = scmp.eq.s32.totalorder %s20, 3
      %p164 = por %p162, %p163
      %p165 = scmp.ne.s32.totalorder %s156, %s157
      %p166 = scmp.eq.s32.totalorder %s20, 0
      %p167 = por %p165, %p166
      %p168 = scmp.ne.s32.totalorder %s156, %s157
      %p169 = scmp.eq.s32.totalorder %s21, 3
      %p170 = por %p168, %p169
      %p172 = scmp.ne.s32.totalorder %s157, %s171
      %p173 = scmp.eq.s32.totalorder %s21, 0
      %p174 = por %p172, %p173
      %s175 = ssub.s32 %s22, %s34
      %s176 = ssub.s32 %s23, %s30
      %s177 = sor.u32 %s175, %s176
      %p178 = scmp.eq.s32.totalorder %s177, 0
      %s180 = sadd.s32 %s179, 1
      %s181 = scalar_select %p178, %s179, %s180
      %p184 = pneg %p178
      %p185 = scmp.eq.s32.totalorder %s15, 3
      %p186 = por %p184, %p185
      %p187 = scmp.ne.s32.totalorder %s179, %s182
      %p188 = scmp.eq.s32.totalorder %s15, 0
      %p189 = por %p187, %p188
      %p190 = scmp.ne.s32.totalorder %s179, %s182
      %p191 = scmp.eq.s32.totalorder %s20, 3
      %p192 = por %p190, %p191
      %p193 = scmp.ne.s32.totalorder %s182, %s183
      %p194 = scmp.eq.s32.totalorder %s20, 0
      %p195 = por %p193, %p194
      %p196 = scmp.ne.s32.totalorder %s182, %s183
      %p197 = scmp.eq.s32.totalorder %s21, 3
      %p198 = por %p196, %p197
      %p200 = scmp.ne.s32.totalorder %s183, %s199
      %p201 = scmp.eq.s32.totalorder %s21, 0
      %p202 = por %p200, %p201
      %p203 = scmp.le.s32.totalorder 1, %s15
      %p204 = scmp.lt.s32.totalorder %s15, 5
      %p205 = pnand %p203, %p204
      %p206 = pneg %p205
      // Predicated region
      $region9: #{_resblock_impl.5} parent=5 // pred_check
        _
      $region10: #{_resblock_impl.5} parent=5 // pred_check_branch
        %208 = sbr.rel (%p205) target = $region12
      $region11: #{_resblock_impl.5} parent=5 // pred_region
        %s209 = ssub.s32 %s15, 1
        // Predicated region
        $region13: #{_resblock_impl.5} parent=11 // pred_check
          %p210 = pneg %p104
        $region14: #{_resblock_impl.5} parent=11 // pred_check_branch
          %212 = sbr.rel (%p210) target = $region16
        $region15: #{_resblock_impl.5} parent=11 // pred_region
          _
        $region16: #{_resblock_impl.5} parent=11 // pred_fallthru
          _
        // Predicated region
        $region17: #{_resblock_impl.5} parent=11 // pred_check
          %p213 = pneg %p125
        $region18: #{_resblock_impl.5} parent=11 // pred_check_branch
          %215 = sbr.rel (%p213) target = $region20
        $region19: #{_resblock_impl.5} parent=11 // pred_region
          _
        $region20: #{_resblock_impl.5} parent=11 // pred_fallthru
          _
        // Predicated region
        $region21: #{_resblock_impl.5} parent=11 // pred_check
          %p216 = pneg %p146
        $region22: #{_resblock_impl.5} parent=11 // pred_check_branch
          %218 = sbr.rel (%p216) target = $region24
        $region23: #{_resblock_impl.5} parent=11 // pred_region
          _
        $region24: #{_resblock_impl.5} parent=11 // pred_fallthru
          _
        // Predicated region
        $region25: #{_resblock_impl.5} parent=11 // pred_check
          %p219 = pneg %p167
        $region26: #{_resblock_impl.5} parent=11 // pred_check_branch
          %221 = sbr.rel (%p219) target = $region28
        $region27: #{_resblock_impl.5} parent=11 // pred_region
          _
        $region28: #{_resblock_impl.5} parent=11 // pred_fallthru
          _
      $region12: #{_resblock_impl.5} parent=5 // pred_fallthru
        _
      %p222 = scmp.lt.s32.totalorder %s15, 4
      // Predicated region
      $region29: #{_resblock_impl.5} parent=5 // pred_check
        %p223 = pneg %p222
      $region30: #{_resblock_impl.5} parent=5 // pred_check_branch
        %225 = sbr.rel (%p223) target = $region32
      $region31: #{_resblock_impl.5} parent=5 // pred_region
        // Predicated region
        $region33: #{_resblock_impl.5} parent=31 // pred_check
          %p226 = pneg %p49
        $region34: #{_resblock_impl.5} parent=31 // pred_check_branch
          %228 = sbr.rel (%p226) target = $region36
        $region35: #{_resblock_impl.5} parent=31 // pred_region
          %s229 = smul.u32 4, %s23
          %p230 = scmp.lt.s32.totalorder %s22, 1
          %s231 = scalar_select %p230, %s22, 1
          %p232 = scmp.lt.s32.totalorder %s229, 7
          %s233 = scalar_select %p232, %s229, 7
          %s234 = smul.addr %s231, 8
          %s235 = sadd.s32 %s233, %s234
          %s236 = smul.addr %s235, 8
          %s237 = scalar_lea.vmem %s0, %s236
          %s238 = smul.u32 4, %s23
        $region36: #{_resblock_impl.5} parent=31 // pred_fallthru
          _
        // Predicated region
        $region37: #{_resblock_impl.5} parent=31 // pred_check
          %p239 = pneg %p77
        $region38: #{_resblock_impl.5} parent=31 // pred_check_branch
          %241 = sbr.rel (%p239) target = $region40
        $region39: #{_resblock_impl.5} parent=31 // pred_region
          %s242 = smul.u32 4, %s23
          %p243 = scmp.lt.s32.totalorder %s22, 1
          %s244 = scalar_select %p243, %s22, 1
          %p245 = scmp.lt.s32.totalorder %s242, 7
          %s246 = scalar_select %p245, %s242, 7
          %s247 = smul.addr %s244, 8
          %s248 = sadd.s32 %s246, %s247
          %s249 = smul.addr %s248, 8
          %s250 = scalar_lea.vmem %s1, %s249
          %s251 = smul.u32 4, %s23
        $region40: #{_resblock_impl.5} parent=31 // pred_fallthru
          _
      $region32: #{_resblock_impl.5} parent=5 // pred_fallthru
        _
      %p252 = scmp.le.s32.totalorder 1, %s15
      %p253 = scmp.lt.s32.totalorder %s15, 5
      %p254 = pnand %p252, %p253
      %p255 = pneg %p254
      // Predicated region
      $region41: #{_resblock_impl.5} parent=5 // pred_check
        _
      $region42: #{_resblock_impl.5} parent=5 // pred_check_branch
        %257 = sbr.rel (%p254) target = $region44
      $region43: #{_resblock_impl.5} parent=5 // pred_region
        %s258 = ssub.s32 %s15, 1
        %s259 = smul.u32 4, %s25
        %p260 = scmp.lt.s32.totalorder %s24, 1
        %s261 = scalar_select %p260, %s24, 1
        %p262 = scmp.lt.s32.totalorder %s259, 7
        %s263 = scalar_select %p262, %s259, 7
        %s264 = smul.addr %s261, 8
        %s265 = sadd.s32 %s263, %s264
        %s266 = smul.addr %s265, 8
        %s267 = scalar_lea.vmem %s0, %s266
        %p268 = pneg %p55
        %p269 = pneg %p52
        %s270 = smul.u32 4, %s25
        %p271 = scmp.lt.s32.totalorder %s24, 1
        %s272 = scalar_select %p271, %s24, 1
        %p273 = scmp.lt.s32.totalorder %s270, 7
        %s274 = scalar_select %p273, %s270, 7
        %s275 = smul.addr %s272, 8
        %s276 = sadd.s32 %s274, %s275
        %s277 = smul.addr %s276, 8
        %s278 = scalar_lea.vmem %s1, %s277
        %p279 = pneg %p83
        %p280 = pneg %p80
        %p281 = pneg %p104
        %p282 = pneg %p101
        %p283 = pneg %p125
        %p284 = pneg %p122
        %p285 = pneg %p146
        %p286 = pneg %p143
        %p287 = pneg %p167
        %p288 = pneg %p164
        %p289 = pneg %p195
        %p290 = pneg %p192
        %s291 = sand.u32 %s182, 1
        %s292 = scalar_lea.sflag [#allocation3], %s291
        %s293 = sand.u32 %s182, 1
        %s294 = smul.addr %s293, 32
        %s295 = scalar_lea.vmem [#allocation2], %s294
        %s296 = smul.u32 4, %s25
        %p297 = scmp.lt.s32.totalorder %s24, 1
        %s298 = scalar_select %p297, %s24, 1
        %p299 = scmp.lt.s32.totalorder %s296, 7
        %s300 = scalar_select %p299, %s296, 7
        %s301 = smul.addr %s298, 8
        %s302 = sadd.s32 %s300, %s301
        %s303 = smul.addr %s302, 8
        %s304 = scalar_lea.vmem %s0, %s303
        %s305 = smul.u32 4, %s25
        %s306 = smul.u32 4, %s25
        %p307 = scmp.lt.s32.totalorder %s24, 1
        %s308 = scalar_select %p307, %s24, 1
        %p309 = scmp.lt.s32.totalorder %s306, 7
        %s310 = scalar_select %p309, %s306, 7
        %s311 = smul.addr %s308, 8
        %s312 = sadd.s32 %s310, %s311
        %s313 = smul.addr %s312, 8
        %s314 = scalar_lea.vmem %s1, %s313
        %s315 = smul.u32 4, %s25
        %s316 = smul.u32 4, %s25
        %v318 = vld [vmem:[%s304] sm:$0xff]
        %v319 = vld [vmem:[%s304 + $0x8] sm:$0xff]
        %v320 = vld [vmem:[%s304 + $0x10] sm:$0xff]
        %v321 = vld [vmem:[%s304 + $0x18] sm:$0xff]
        %v322 = vld [vmem:[%s2] sm:$0x1]
        %v323 = vld [vmem:[%s3] sm:$0x1]
        %v325 = vlaneseq
        %v326 = vshrl.u32 %v325, 7
        %v327 = vsub.s32 0, %v326
        %v328 = vrot.slane %v322, %v327
        %v330 = vmul.f32 %v318, %v328
        %v331 = vmul.f32 %v319, %v328
        %v332 = vmul.f32 %v320, %v328
        %v333 = vmul.f32 %v321, %v328
        %v335 = vlaneseq
        %v336 = vshrl.u32 %v335, 7
        %v337 = vsub.s32 0, %v336
        %v338 = vrot.slane %v323, %v337
        %v340 = vadd.f32 %v330, %v338
        %v341 = vadd.f32 %v331, %v338
        %v342 = vadd.f32 %v332, %v338
        %v343 = vadd.f32 %v333, %v338
        %v344 = vmax.f32 %v340, 0.0
        %v345 = vmax.f32 %v341, 0.0
        %v346 = vmax.f32 %v342, 0.0
        %v347 = vmax.f32 %v343, 0.0
        %v348 = vld [vmem:[%s4] sm:$0xf]
        %v349 = vpack.c.bf16 %v345, %v344
        %v350 = vpack.c.bf16 %v347, %v346
        %vm351 = vcmask 64512
        %v353 = vsel %vm351, %v349, 0
        %v356 = vsel %vm351, %v350, 0
        %vm358 = vcmask 1043456
        %v360 = vsel %vm358, %v348, 0
        %362 = vmatprep.subr.bf16.mxu0 0
        %363 = vmatpush1.bf16.msra.mxu0 0
        %364 = vmatprep.subr.bf16.mxu0 0
        %365 = vmatpush1.bf16.msra.mxu0 0
        %366 = vmatprep.subr.bf16.mxu0 0
        %367 = vmatpush1.bf16.msra.mxu0 0
        %368 = vmatprep.subr.bf16.mxu0 0
        %369 = vmatpush1.bf16.msra.mxu0 0
        %370 = vmatprep.subr.bf16.mxu0 0
        %371 = vmatpush1.bf16.msra.mxu0 0
        %372 = vmatprep.subr.bf16.mxu0 0
        %373 = vmatpush1.bf16.msra.mxu0 0
        %374 = vmatprep.subr.bf16.mxu0 0
        %375 = vmatpush1.bf16.msra.mxu0 0
        %376 = vmatprep.subr.bf16.mxu0 0
        %377 = vmatpush1.bf16.msra.mxu0 %v360
        %378 = vmatprep.subr.bf16.mxu0 0
        %379 = vmatpush2.bf16.msra.mxu0 0
        %380 = vmatprep.subr.bf16.mxu0 0
        %381 = vmatpush2.bf16.msra.mxu0 0
        %382 = vmatprep.subr.bf16.mxu0 0
        %383 = vmatpush2.bf16.msra.mxu0 0
        %384 = vmatprep.subr.bf16.mxu0 0
        %385 = vmatpush2.bf16.msra.mxu0 0
        %386 = vmatprep.subr.bf16.mxu0 0
        %387 = vmatpush2.bf16.msra.mxu0 0
        %388 = vmatprep.subr.bf16.mxu0 0
        %389 = vmatpush2.bf16.msra.mxu0 0
        %390 = vmatprep.subr.bf16.mxu0 0
        %391 = vmatpush2.bf16.msra.mxu0 0
        %392 = vmatprep.subr.bf16.mxu0 0
        %393 = vmatpush2.bf16.msra.mxu0 0
        %394 = vmatprep.mubr.bf16.mxu0 0
        %395 = vmatmul.mubr.bf16.gmra.mxu0 %v353
        %v396 = vpop.f32.mrf.mxu0
        %v397 = vadd.f32 0.0, %v396
        %v398 = vpop.f32.mrf.mxu0
        %v399 = vpop.f32.mrf.mxu0
        %v400 = vadd.f32 0.0, %v399
        %v401 = vpop.f32.mrf.mxu0
        %402 = vmatprep.mubr.bf16.mxu0 0
        %403 = vmatmul.mubr.bf16.gmra.mxu0 %v356
        %v404 = vpop.f32.mrf.mxu0
        %v405 = vadd.f32 0.0, %v404
        %v406 = vpop.f32.mrf.mxu0
        %v407 = vpop.f32.mrf.mxu0
        %v408 = vadd.f32 0.0, %v407
        %v409 = vpop.f32.mrf.mxu0
        %410 = vdwg.mxu0
        %v411 = vld [vmem:[%s314] sm:$0xff]
        %v412 = vld [vmem:[%s314 + $0x8] sm:$0xff]
        %v413 = vld [vmem:[%s314 + $0x10] sm:$0xff]
        %v414 = vld [vmem:[%s314 + $0x18] sm:$0xff]
        %v415 = vld [vmem:[%s5] sm:$0xf]
        %v416 = vld [vmem:[%s5 + $0x4] sm:$0xf]
        %v417 = vpack.c.bf16 %v412, %v411
        %v418 = vpack.c.bf16 %v414, %v413
        %v421 = vunpack.c.l.b16 %v415
        %v422 = vunpack.c.l.b16 %v416
        %v423 = vpack.c.b16 %v422, %v421
        %vm425 = vcmask 130048
        %v427 = vsel %vm425, %v417, 0
        %v430 = vsel %vm425, %v418, 0
        %432 = vmatprep.subr.bf16.mxu0 0
        %433 = vmatpush1.bf16.msra.mxu0 0
        %434 = vmatprep.subr.bf16.mxu0 0
        %435 = vmatpush1.bf16.msra.mxu0 0
        %436 = vmatprep.subr.bf16.mxu0 0
        %437 = vmatpush1.bf16.msra.mxu0 0
        %438 = vmatprep.subr.bf16.mxu0 0
        %439 = vmatpush1.bf16.msra.mxu0 0
        %440 = vmatprep.subr.bf16.mxu0 0
        %441 = vmatpush1.bf16.msra.mxu0 0
        %442 = vmatprep.subr.bf16.mxu0 0
        %443 = vmatpush1.bf16.msra.mxu0 0
        %444 = vmatprep.subr.bf16.mxu0 0
        %445 = vmatpush1.bf16.msra.mxu0 0
        %446 = vmatprep.subr.bf16.mxu0 0
        %447 = vmatpush1.bf16.msra.mxu0 %v423
        %448 = vmatprep.subr.bf16.mxu0 0
        %449 = vmatpush2.bf16.msra.mxu0 0
        %450 = vmatprep.subr.bf16.mxu0 0
        %451 = vmatpush2.bf16.msra.mxu0 0
        %452 = vmatprep.subr.bf16.mxu0 0
        %453 = vmatpush2.bf16.msra.mxu0 0
        %454 = vmatprep.subr.bf16.mxu0 0
        %455 = vmatpush2.bf16.msra.mxu0 0
        %456 = vmatprep.subr.bf16.mxu0 0
        %457 = vmatpush2.bf16.msra.mxu0 0
        %458 = vmatprep.subr.bf16.mxu0 0
        %459 = vmatpush2.bf16.msra.mxu0 0
        %460 = vmatprep.subr.bf16.mxu0 0
        %461 = vmatpush2.bf16.msra.mxu0 0
        %462 = vmatprep.subr.bf16.mxu0 0
        %463 = vmatpush2.bf16.msra.mxu0 0
        %464 = vmatprep.mubr.bf16.mxu0 0
        %465 = vmatmul.mubr.bf16.gmra.mxu0 %v427
        %v466 = vpop.f32.mrf.mxu0
        %v467 = vadd.f32 0.0, %v466
        %v468 = vpop.f32.mrf.mxu0
        %v469 = vpop.f32.mrf.mxu0
        %v470 = vadd.f32 0.0, %v469
        %v471 = vpop.f32.mrf.mxu0
        %472 = vmatprep.mubr.bf16.mxu0 0
        %473 = vmatmul.mubr.bf16.gmra.mxu0 %v430
        %v474 = vpop.f32.mrf.mxu0
        %v475 = vadd.f32 0.0, %v474
        %v476 = vpop.f32.mrf.mxu0
        %v477 = vpop.f32.mrf.mxu0
        %v478 = vadd.f32 0.0, %v477
        %v479 = vpop.f32.mrf.mxu0
        %480 = vdwg.mxu0
        %v481 = vadd.f32 %v397, %v467
        %v482 = vadd.f32 %v400, %v470
        %v483 = vadd.f32 %v405, %v475
        %v484 = vadd.f32 %v408, %v478
        %vm485 = vcmask 261120
        %486 = vst.msk [vmem:[%s295] sm:$0xff] %vm485, %v481
        %487 = vst.msk [vmem:[%s295 + $0x8] sm:$0xff] %vm485, %v482
        %488 = vst.msk [vmem:[%s295 + $0x10] sm:$0xff] %vm485, %v483
        %489 = vst.msk [vmem:[%s295 + $0x18] sm:$0xff] %vm485, %v484
        %s490 = sand.u32 %s182, 1
        %s491 = scalar_lea.sflag [#allocation3], %s490
        %s492 = sand.u32 %s182, 1
        %s493 = smul.addr %s492, 32
        %s494 = scalar_lea.vmem [#allocation2], %s493
        // Predicated region
        $region45: #{_resblock_impl.5} parent=43 // pred_check
          %p495 = pneg %p192
        $region46: #{_resblock_impl.5} parent=43 // pred_check_branch
          %497 = sbr.rel (%p495) target = $region48
        $region47: #{_resblock_impl.5} parent=43 // pred_region
          %s498 = smul.u32 4, %s25
          %s500 = ssub.s32 512, 512
          %501 = vsyncadd %s491, %s500
          %s502 = smul.addr %s24, 8
          %s503 = sadd.s32 %s498, %s502
          %s504 = smul.addr %s503, 128
          %s505 = scalar_lea.hbm %s6, %s504
          %s506 = sshll.u32 %s494, 4
          %s507 = int_to_ptr.vmem [resolvable:$true] %s506
          %512 = dma.vmem_to_hbm [thread:$0]  %s507, 512, %s505, %s491, 128, 128, 8
        $region48: #{_resblock_impl.5} parent=43 // pred_fallthru
          _
      $region44: #{_resblock_impl.5} parent=5 // pred_fallthru
        _
      %p513 = scmp.le.s32.totalorder 2, %s15
      // Predicated region
      $region49: #{_resblock_impl.5} parent=5 // pred_check
        %p514 = pneg %p513
      $region50: #{_resblock_impl.5} parent=5 // pred_check_branch
        %516 = sbr.rel (%p514) target = $region52
      $region51: #{_resblock_impl.5} parent=5 // pred_region
        %s517 = ssub.s32 %s15, 2
        // Predicated region
        $region53: #{_resblock_impl.5} parent=51 // pred_check
          %p518 = pneg %p198
        $region54: #{_resblock_impl.5} parent=51 // pred_check_branch
          %520 = sbr.rel (%p518) target = $region56
        $region55: #{_resblock_impl.5} parent=51 // pred_region
          %s521 = sand.u32 %s183, 1
          %s522 = scalar_lea.sflag [#allocation3], %s521
          %s523 = sand.u32 %s183, 1
          %s524 = smul.addr %s523, 32
          %s525 = scalar_lea.vmem [#allocation2], %s524
          %526 = dma.done %s522, 512
        $region56: #{_resblock_impl.5} parent=51 // pred_fallthru
          _
      $region52: #{_resblock_impl.5} parent=5 // pred_fallthru
        _
    $region6: #{_resblock_impl.5} parent=1 // loop_footer
      %s19 = sadd.s32 1, %s15
    $region7: #{_resblock_impl.5} parent=1 // loop_footer_branch
      %14 = sbr.rel target = $region3
    $region8: #{_resblock_impl.5} parent=1 // loop_exit
      _
    %527 = vsyncpa [#allocation3], 1
    %s528 = scalar_lea.sflag [#allocation3], 1
    %529 = vsyncpa %s528, 1

// kernel: _resblock_impl.3
$region0: #{_resblock_impl.3}
  #allocation0 [shape = 'u32[]', space=smem, size = 0x4, offset = 0x4, fixed_abs, tag = 'smem constant byte address 0x4 - core index']
  #allocation1 [shape = 'u32[144,128]{1,0:T(1,128)}', space=vmem, size = 0x12000, scoped, tag = 'internal scratch']
  %s0 = inlined_call_operand.vmem [shape: f32[2,8,8,16], index: 0, kind: input, shape index: {}]
  %s1 = inlined_call_operand.vmem [shape: f32[1,16], index: 1, kind: input, shape index: {}]
  %s2 = inlined_call_operand.vmem [shape: f32[1,16], index: 2, kind: input, shape index: {}]
  %s3 = inlined_call_operand.vmem [shape: bf16[16,8], index: 3, kind: input, shape index: {}]
  %s4 = inlined_call_operand.vmem [shape: f32[2,8,8,8], index: 4, kind: output, shape index: {0}]
  %s5 = inlined_call_operand.vmem [shape: f32[2,2,2,8], index: 5, kind: output, shape index: {1}]
  %6 = xla_tuple %s4, %s5
  %s7 = sld [smem:[#allocation0]]
  $region57: #{_resblock_impl.3} parent=0
    _
  %s9 = ssub.s32 1, %s7
  %s10 = scalar_select 0, %s9, %s7
  loop: start=0, step=1, limit=6
  $region2: #{_resblock_impl.3} parent=0 // loop_pre_header
    _
  $region3: #{_resblock_impl.3} parent=0 // loop_header
    %s12 = sphi 0, %s16
    %p13 = scmp.ge.s32.totalorder %s12, 6
    %s19 = sphi 0, %s31
    %s20 = sphi 0, %s27
    %s21 = sphi 0, %s19
    %s22 = sphi 0, %s20
    %s23 = sphi 0, %s21
    %s24 = sphi 0, %s22
    %s36 = sphi 0, %s38
    %s39 = sphi 0, %s36
    %s40 = sphi 0, %s39
    %s56 = sphi 0, %s40
    %s60 = sphi 0, %s60
    %s62 = sphi 0, %s60
    %s63 = sphi 0, %s62
    %s77 = sphi 0, %s63
    %s81 = sphi 0, %s81
    %s83 = sphi 0, %s81
    %s84 = sphi 0, %s83
    %s98 = sphi 0, %s84
    %s102 = sphi 0, %s102
    %s104 = sphi 0, %s102
    %s105 = sphi 0, %s104
    %s119 = sphi 0, %s105
    %s127 = sphi 0, %s129
    %s130 = sphi 0, %s127
    %s131 = sphi 0, %s130
    %s147 = sphi 0, %s131
    %s155 = sphi 0, %s157
    %s158 = sphi 0, %s155
    %s159 = sphi 0, %s158
    %s175 = sphi 0, %s159
  $region4: #{_resblock_impl.3} parent=0 // loop_header_branch
    %15 = sbr.rel (%p13) target = $region8
  $region5: #{_resblock_impl.3} parent=0 // loop_body
    %s17 = ssub.s32 %s12, 1
    %s18 = ssub.s32 %s12, 2
    %s25 = sadd.s32 1, %s20
    %p26 = scmp.ge.s32.totalorder %s25, 2
    %s27 = scalar_select %p26, 0, %s25
    %s28 = sadd.s32 1, %s19
    %s29 = scalar_select %p26, %s28, %s19
    %p30 = scmp.ge.s32.totalorder %s29, 2
    %s31 = scalar_select %p30, 0, %s29
    %s32 = ssub.s32 %s19, %s31
    %s33 = ssub.s32 %s20, %s27
    %s34 = sor.u32 %s32, %s33
    %p35 = scmp.eq.s32.totalorder %s34, 0
    %s37 = sadd.s32 %s36, 1
    %s38 = scalar_select %p35, %s36, %s37
    %p41 = pneg %p35
    %p42 = scmp.eq.s32.totalorder %s12, 3
    %p43 = por %p41, %p42
    %p44 = scmp.ne.s32.totalorder %s36, %s39
    %p45 = scmp.eq.s32.totalorder %s12, 0
    %p46 = por %p44, %p45
    %p47 = scmp.ne.s32.totalorder %s36, %s39
    %p48 = scmp.eq.s32.totalorder %s17, 3
    %p49 = por %p47, %p48
    %p50 = scmp.ne.s32.totalorder %s39, %s40
    %p51 = scmp.eq.s32.totalorder %s17, 0
    %p52 = por %p50, %p51
    %p53 = scmp.ne.s32.totalorder %s39, %s40
    %p54 = scmp.eq.s32.totalorder %s18, 3
    %p55 = por %p53, %p54
    %p57 = scmp.ne.s32.totalorder %s40, %s56
    %p58 = scmp.eq.s32.totalorder %s18, 0
    %p59 = por %p57, %p58
    %s61 = sadd.s32 %s60, 1
    %p64 = scmp.eq.s32.totalorder %s12, 3
    %p65 = scmp.ne.s32.totalorder %s60, %s62
    %p66 = scmp.eq.s32.totalorder %s12, 0
    %p67 = por %p65, %p66
    %p68 = scmp.ne.s32.totalorder %s60, %s62
    %p69 = scmp.eq.s32.totalorder %s17, 3
    %p70 = por %p68, %p69
    %p71 = scmp.ne.s32.totalorder %s62, %s63
    %p72 = scmp.eq.s32.totalorder %s17, 0
    %p73 = por %p71, %p72
    %p74 = scmp.ne.s32.totalorder %s62, %s63
    %p75 = scmp.eq.s32.totalorder %s18, 3
    %p76 = por %p74, %p75
    %p78 = scmp.ne.s32.totalorder %s63, %s77
    %p79 = scmp.eq.s32.totalorder %s18, 0
    %p80 = por %p78, %p79
    %s82 = sadd.s32 %s81, 1
    %p85 = scmp.eq.s32.totalorder %s12, 3
    %p86 = scmp.ne.s32.totalorder %s81, %s83
    %p87 = scmp.eq.s32.totalorder %s12, 0
    %p88 = por %p86, %p87
    %p89 = scmp.ne.s32.totalorder %s81, %s83
    %p90 = scmp.eq.s32.totalorder %s17, 3
    %p91 = por %p89, %p90
    %p92 = scmp.ne.s32.totalorder %s83, %s84
    %p93 = scmp.eq.s32.totalorder %s17, 0
    %p94 = por %p92, %p93
    %p95 = scmp.ne.s32.totalorder %s83, %s84
    %p96 = scmp.eq.s32.totalorder %s18, 3
    %p97 = por %p95, %p96
    %p99 = scmp.ne.s32.totalorder %s84, %s98
    %p100 = scmp.eq.s32.totalorder %s18, 0
    %p101 = por %p99, %p100
    %s103 = sadd.s32 %s102, 1
    %p106 = scmp.eq.s32.totalorder %s12, 3
    %p107 = scmp.ne.s32.totalorder %s102, %s104
    %p108 = scmp.eq.s32.totalorder %s12, 0
    %p109 = por %p107, %p108
    %p110 = scmp.ne.s32.totalorder %s102, %s104
    %p111 = scmp.eq.s32.totalorder %s17, 3
    %p112 = por %p110, %p111
    %p113 = scmp.ne.s32.totalorder %s104, %s105
    %p114 = scmp.eq.s32.totalorder %s17, 0
    %p115 = por %p113, %p114
    %p116 = scmp.ne.s32.totalorder %s104, %s105
    %p117 = scmp.eq.s32.totalorder %s18, 3
    %p118 = por %p116, %p117
    %p120 = scmp.ne.s32.totalorder %s105, %s119
    %p121 = scmp.eq.s32.totalorder %s18, 0
    %p122 = por %p120, %p121
    %s123 = ssub.s32 %s19, %s31
    %s124 = ssub.s32 %s20, %s27
    %s125 = sor.u32 %s123, %s124
    %p126 = scmp.eq.s32.totalorder %s125, 0
    %s128 = sadd.s32 %s127, 1
    %s129 = scalar_select %p126, %s127, %s128
    %p132 = pneg %p126
    %p133 = scmp.eq.s32.totalorder %s12, 3
    %p134 = por %p132, %p133
    %p135 = scmp.ne.s32.totalorder %s127, %s130
    %p136 = scmp.eq.s32.totalorder %s12, 0
    %p137 = por %p135, %p136
    %p138 = scmp.ne.s32.totalorder %s127, %s130
    %p139 = scmp.eq.s32.totalorder %s17, 3
    %p140 = por %p138, %p139
    %p141 = scmp.ne.s32.totalorder %s130, %s131
    %p142 = scmp.eq.s32.totalorder %s17, 0
    %p143 = por %p141, %p142
    %p144 = scmp.ne.s32.totalorder %s130, %s131
    %p145 = scmp.eq.s32.totalorder %s18, 3
    %p146 = por %p144, %p145
    %p148 = scmp.ne.s32.totalorder %s131, %s147
    %p149 = scmp.eq.s32.totalorder %s18, 0
    %p150 = por %p148, %p149
    %s151 = ssub.s32 %s19, %s31
    %s152 = ssub.s32 %s20, %s27
    %s153 = sor.u32 %s151, %s152
    %p154 = scmp.eq.s32.totalorder %s153, 0
    %s156 = sadd.s32 %s155, 1
    %s157 = scalar_select %p154, %s155, %s156
    %p160 = pneg %p154
    %p161 = scmp.eq.s32.totalorder %s12, 3
    %p162 = por %p160, %p161
    %p163 = scmp.ne.s32.totalorder %s155, %s158
    %p164 = scmp.eq.s32.totalorder %s12, 0
    %p165 = por %p163, %p164
    %p166 = scmp.ne.s32.totalorder %s155, %s158
    %p167 = scmp.eq.s32.totalorder %s17, 3
    %p168 = por %p166, %p167
    %p169 = scmp.ne.s32.totalorder %s158, %s159
    %p170 = scmp.eq.s32.totalorder %s17, 0
    %p171 = por %p169, %p170
    %p172 = scmp.ne.s32.totalorder %s158, %s159
    %p173 = scmp.eq.s32.totalorder %s18, 3
    %p174 = por %p172, %p173
    %p176 = scmp.ne.s32.totalorder %s159, %s175
    %p177 = scmp.eq.s32.totalorder %s18, 0
    %p178 = por %p176, %p177
    %p179 = scmp.le.s32.totalorder 1, %s12
    %p180 = scmp.lt.s32.totalorder %s12, 5
    %p181 = pnand %p179, %p180
    %p182 = pneg %p181
    // Predicated region
    $region9: #{_resblock_impl.3} parent=5 // pred_check
      _
    $region10: #{_resblock_impl.3} parent=5 // pred_check_branch
      %184 = sbr.rel (%p181) target = $region12
    $region11: #{_resblock_impl.3} parent=5 // pred_region
      %s185 = ssub.s32 %s12, 1
      // Predicated region
      $region13: #{_resblock_impl.3} parent=11 // pred_check
        %p186 = pneg %p73
      $region14: #{_resblock_impl.3} parent=11 // pred_check_branch
        %188 = sbr.rel (%p186) target = $region16
      $region15: #{_resblock_impl.3} parent=11 // pred_region
        _
      $region16: #{_resblock_impl.3} parent=11 // pred_fallthru
        _
      // Predicated region
      $region17: #{_resblock_impl.3} parent=11 // pred_check
        %p189 = pneg %p94
      $region18: #{_resblock_impl.3} parent=11 // pred_check_branch
        %191 = sbr.rel (%p189) target = $region20
      $region19: #{_resblock_impl.3} parent=11 // pred_region
        _
      $region20: #{_resblock_impl.3} parent=11 // pred_fallthru
        _
      // Predicated region
      $region21: #{_resblock_impl.3} parent=11 // pred_check
        %p192 = pneg %p115
      $region22: #{_resblock_impl.3} parent=11 // pred_check_branch
        %194 = sbr.rel (%p192) target = $region24
      $region23: #{_resblock_impl.3} parent=11 // pred_region
        _
      $region24: #{_resblock_impl.3} parent=11 // pred_fallthru
        _
    $region12: #{_resblock_impl.3} parent=5 // pred_fallthru
      _
    %p195 = scmp.lt.s32.totalorder %s12, 4
    // Predicated region
    $region25: #{_resblock_impl.3} parent=5 // pred_check
      %p196 = pneg %p195
    $region26: #{_resblock_impl.3} parent=5 // pred_check_branch
      %198 = sbr.rel (%p196) target = $region28
    $region27: #{_resblock_impl.3} parent=5 // pred_region
      // Predicated region
      $region29: #{_resblock_impl.3} parent=27 // pred_check
        %p199 = pneg %p46
      $region30: #{_resblock_impl.3} parent=27 // pred_check_branch
        %201 = sbr.rel (%p199) target = $region32
      $region31: #{_resblock_impl.3} parent=27 // pred_region
        %s202 = smul.u32 4, %s20
        %p203 = scmp.lt.s32.totalorder %s19, 1
        %s204 = scalar_select %p203, %s19, 1
        %p205 = scmp.lt.s32.totalorder %s202, 7
        %s206 = scalar_select %p205, %s202, 7
        %s207 = smul.addr %s204, 8
        %s208 = sadd.s32 %s206, %s207
        %s209 = smul.addr %s208, 8
        %s210 = scalar_lea.vmem %s0, %s209
        %s211 = smul.u32 4, %s20
      $region32: #{_resblock_impl.3} parent=27 // pred_fallthru
        _
    $region28: #{_resblock_impl.3} parent=5 // pred_fallthru
      _
    %p212 = scmp.le.s32.totalorder 1, %s12
    %p213 = scmp.lt.s32.totalorder %s12, 5
    %p214 = pnand %p212, %p213
    %p215 = pneg %p214
    // Predicated region
    $region33: #{_resblock_impl.3} parent=5 // pred_check
      _
    $region34: #{_resblock_impl.3} parent=5 // pred_check_branch
      %217 = sbr.rel (%p214) target = $region36
    $region35: #{_resblock_impl.3} parent=5 // pred_region
      %s218 = ssub.s32 %s12, 1
      %s219 = smul.u32 4, %s22
      %p220 = scmp.lt.s32.totalorder %s21, 1
      %s221 = scalar_select %p220, %s21, 1
      %p222 = scmp.lt.s32.totalorder %s219, 7
      %s223 = scalar_select %p222, %s219, 7
      %s224 = smul.addr %s221, 8
      %s225 = sadd.s32 %s223, %s224
      %s226 = smul.addr %s225, 8
      %s227 = scalar_lea.vmem %s0, %s226
      %p228 = pneg %p52
      %p229 = pneg %p49
      %p230 = pneg %p73
      %p231 = pneg %p70
      %p232 = pneg %p94
      %p233 = pneg %p91
      %p234 = pneg %p115
      %p235 = pneg %p112
      %p236 = pneg %p143
      %p237 = pneg %p140
      %s238 = smul.u32 4, %s22
      %p239 = scmp.lt.s32.totalorder %s21, 1
      %s240 = scalar_select %p239, %s21, 1
      %p241 = scmp.lt.s32.totalorder %s238, 7
      %s242 = scalar_select %p241, %s238, 7
      %s243 = smul.addr %s240, 8
      %s244 = sadd.s32 %s242, %s243
      %s245 = smul.addr %s244, 8
      %s246 = scalar_lea.vmem %s4, %s245
      %p247 = pneg %p171
      %p248 = pneg %p168
      %p249 = scmp.lt.s32.totalorder %s21, 1
      %s250 = scalar_select %p249, %s21, 1
      %p251 = scmp.lt.s32.totalorder %s22, 1
      %s252 = scalar_select %p251, %s22, 1
      %s253 = smul.addr %s250, 2
      %s254 = sadd.s32 %s252, %s253
      %s255 = smul.addr %s254, 2
      %s256 = scalar_lea.vmem %s5, %s255
      %s257 = smul.u32 4, %s22
      %p258 = scmp.lt.s32.totalorder %s21, 1
      %s259 = scalar_select %p258, %s21, 1
      %p260 = scmp.lt.s32.totalorder %s257, 7
      %s261 = scalar_select %p260, %s257, 7
      %s262 = smul.addr %s259, 8
      %s263 = sadd.s32 %s261, %s262
      %s264 = smul.addr %s263, 8
      %s265 = scalar_lea.vmem %s0, %s264
      %s266 = smul.u32 4, %s22
      %s267 = smul.u32 4, %s22
      %p268 = scmp.lt.s32.totalorder %s21, 1
      %s269 = scalar_select %p268, %s21, 1
      %p270 = scmp.lt.s32.totalorder %s267, 7
      %s271 = scalar_select %p270, %s267, 7
      %s272 = smul.addr %s269, 8
      %s273 = sadd.s32 %s271, %s272
      %s274 = smul.addr %s273, 8
      %s275 = scalar_lea.vmem %s4, %s274
      %s276 = smul.u32 4, %s22
      %p277 = scmp.lt.s32.totalorder %s21, 1
      %s278 = scalar_select %p277, %s21, 1
      %p279 = scmp.lt.s32.totalorder %s22, 1
      %s280 = scalar_select %p279, %s22, 1
      %s281 = smul.addr %s278, 2
      %s282 = sadd.s32 %s280, %s281
      %s283 = smul.addr %s282, 2
      %s284 = scalar_lea.vmem %s5, %s283
      %v286 = vld [vmem:[%s265] sm:$0xff]
      %v287 = vld [vmem:[%s265 + $0x8] sm:$0xff]
      %v288 = vld [vmem:[%s265 + $0x10] sm:$0xff]
      %v289 = vld [vmem:[%s265 + $0x18] sm:$0xff]
      %v290 = vld [vmem:[%s1] sm:$0x1]
      %v291 = vld [vmem:[%s2] sm:$0x1]
      %v293 = vlaneseq
      %v294 = vshrl.u32 %v293, 7
      %v295 = vsub.s32 0, %v294
      %v296 = vrot.slane %v290, %v295
      %v298 = vmul.f32 %v286, %v296
      %v299 = vmul.f32 %v287, %v296
      %v300 = vmul.f32 %v288, %v296
      %v301 = vmul.f32 %v289, %v296
      %v303 = vlaneseq
      %v304 = vshrl.u32 %v303, 7
      %v305 = vsub.s32 0, %v304
      %v306 = vrot.slane %v291, %v305
      %v308 = vadd.f32 %v298, %v306
      %v309 = vadd.f32 %v299, %v306
      %v310 = vadd.f32 %v300, %v306
      %v311 = vadd.f32 %v301, %v306
      %v312 = vmax.f32 %v308, 0.0
      %v313 = vmax.f32 %v309, 0.0
      %v314 = vmax.f32 %v310, 0.0
      %v315 = vmax.f32 %v311, 0.0
      %v316 = vld [vmem:[%s3] sm:$0xf]
      %v317 = vld [vmem:[%s3 + $0x4] sm:$0xf]
      %v318 = vpack.c.bf16 %v313, %v312
      %v319 = vpack.c.bf16 %v315, %v314
      %v322 = vunpack.c.l.b16 %v316
      %v323 = vunpack.c.l.b16 %v317
      %v324 = vpack.c.b16 %v323, %v322
      %vm326 = vcmask 130048
      %v328 = vsel %vm326, %v318, 0
      %v331 = vsel %vm326, %v319, 0
      %333 = vmatprep.subr.bf16.mxu0 0
      %334 = vmatpush1.bf16.msra.mxu0 0
      %335 = vmatprep.subr.bf16.mxu0 0
      %336 = vmatpush1.bf16.msra.mxu0 0
      %337 = vmatprep.subr.bf16.mxu0 0
      %338 = vmatpush1.bf16.msra.mxu0 0
      %339 = vmatprep.subr.bf16.mxu0 0
      %340 = vmatpush1.bf16.msra.mxu0 0
      %341 = vmatprep.subr.bf16.mxu0 0
      %342 = vmatpush1.bf16.msra.mxu0 0
      %343 = vmatprep.subr.bf16.mxu0 0
      %344 = vmatpush1.bf16.msra.mxu0 0
      %345 = vmatprep.subr.bf16.mxu0 0
      %346 = vmatpush1.bf16.msra.mxu0 0
      %347 = vmatprep.subr.bf16.mxu0 0
      %348 = vmatpush1.bf16.msra.mxu0 %v324
      %349 = vmatprep.subr.bf16.mxu0 0
      %350 = vmatpush2.bf16.msra.mxu0 0
      %351 = vmatprep.subr.bf16.mxu0 0
      %352 = vmatpush2.bf16.msra.mxu0 0
      %353 = vmatprep.subr.bf16.mxu0 0
      %354 = vmatpush2.bf16.msra.mxu0 0
      %355 = vmatprep.subr.bf16.mxu0 0
      %356 = vmatpush2.bf16.msra.mxu0 0
      %357 = vmatprep.subr.bf16.mxu0 0
      %358 = vmatpush2.bf16.msra.mxu0 0
      %359 = vmatprep.subr.bf16.mxu0 0
      %360 = vmatpush2.bf16.msra.mxu0 0
      %361 = vmatprep.subr.bf16.mxu0 0
      %362 = vmatpush2.bf16.msra.mxu0 0
      %363 = vmatprep.subr.bf16.mxu0 0
      %364 = vmatpush2.bf16.msra.mxu0 0
      %365 = vmatprep.mubr.bf16.mxu0 0
      %366 = vmatmul.mubr.bf16.gmra.mxu0 %v328
      %v367 = vpop.f32.mrf.mxu0
      %v368 = vadd.f32 0.0, %v367
      %v369 = vpop.f32.mrf.mxu0
      %v370 = vpop.f32.mrf.mxu0
      %v371 = vadd.f32 0.0, %v370
      %v372 = vpop.f32.mrf.mxu0
      %373 = vmatprep.mubr.bf16.mxu0 0
      %374 = vmatmul.mubr.bf16.gmra.mxu0 %v331
      %v375 = vpop.f32.mrf.mxu0
      %v376 = vadd.f32 0.0, %v375
      %v377 = vpop.f32.mrf.mxu0
      %v378 = vpop.f32.mrf.mxu0
      %v379 = vadd.f32 0.0, %v378
      %v380 = vpop.f32.mrf.mxu0
      %381 = vdwg.mxu0
      %vm382 = vcmask 64512
      %383 = vst.msk [vmem:[%s275] sm:$0xff] %vm382, %v368
      %384 = vst.msk [vmem:[%s275 + $0x8] sm:$0xff] %vm382, %v371
      %385 = vst.msk [vmem:[%s275 + $0x10] sm:$0xff] %vm382, %v376
      %386 = vst.msk [vmem:[%s275 + $0x18] sm:$0xff] %vm382, %v379
      %v387 = vsel %vm382, %v368, 0.0
      %v388 = vsel %vm382, %v371, 0.0
      %v389 = vadd.f32 %v387, %v388
      %v390 = vsel %vm382, %v376, 0.0
      %v391 = vadd.f32 %v389, %v390
      %v392 = vsel %vm382, %v379, 0.0
      %v393 = vadd.f32 %v391, %v392
      %v394 = vrot.slane %v393, 4
      %v395 = vadd.f32 %v393, %v394
      %v396 = vrot.slane %v395, 2
      %v397 = vadd.f32 %v395, %v396
      %v398 = vrot.slane %v397, 1
      %v399 = vadd.f32 %v397, %v398
      %v400 = vmul.f32 %v368, %v368
      %v401 = vmul.f32 %v371, %v371
      %v402 = vmul.f32 %v376, %v376
      %v403 = vmul.f32 %v379, %v379
      %v404 = vsel %vm382, %v400, 0.0
      %v405 = vsel %vm382, %v401, 0.0
      %v406 = vadd.f32 %v404, %v405
      %v407 = vsel %vm382, %v402, 0.0
      %v408 = vadd.f32 %v406, %v407
      %v409 = vsel %vm382, %v403, 0.0
      %v410 = vadd.f32 %v408, %v409
      %v411 = vrot.slane %v410, 4
      %v412 = vadd.f32 %v410, %v411
      %v413 = vrot.slane %v412, 2
      %v414 = vadd.f32 %v412, %v413
      %v415 = vrot.slane %v414, 1
      %v416 = vadd.f32 %v414, %v415
      %vm417 = vcmask 1040384
      %v418 = vsel %vm417, %v399, %v416
      %vm419 = vcmask 58368
      %420 = vst.msk [vmem:[%s284] sm:$0x3] %vm419, %v418
      %s421 = smul.u32 4, %s22
      %p422 = scmp.lt.s32.totalorder %s21, 1
      %s423 = scalar_select %p422, %s21, 1
      %p424 = scmp.lt.s32.totalorder %s421, 7
      %s425 = scalar_select %p424, %s421, 7
      %s426 = smul.addr %s423, 8
      %s427 = sadd.s32 %s425, %s426
      %s428 = smul.addr %s427, 8
      %s429 = scalar_lea.vmem %s4, %s428
      %p430 = scmp.lt.s32.totalorder %s21, 1
      %s431 = scalar_select %p430, %s21, 1
      %p432 = scmp.lt.s32.totalorder %s22, 1
      %s433 = scalar_select %p432, %s22, 1
      %s434 = smul.addr %s431, 2
      %s435 = sadd.s32 %s433, %s434
      %s436 = smul.addr %s435, 2
      %s437 = scalar_lea.vmem %s5, %s436
      // Predicated region
      $region37: #{_resblock_impl.3} parent=35 // pred_check
        %p438 = pneg %p140
      $region38: #{_resblock_impl.3} parent=35 // pred_check_branch
        %440 = sbr.rel (%p438) target = $region40
      $region39: #{_resblock_impl.3} parent=35 // pred_region
        %s441 = smul.u32 4, %s22
      $region40: #{_resblock_impl.3} parent=35 // pred_fallthru
        _
      // Predicated region
      $region41: #{_resblock_impl.3} parent=35 // pred_check
        %p442 = pneg %p168
      $region42: #{_resblock_impl.3} parent=35 // pred_check_branch
        %444 = sbr.rel (%p442) target = $region44
      $region43: #{_resblock_impl.3} parent=35 // pred_region
        _
      $region44: #{_resblock_impl.3} parent=35 // pred_fallthru
        _
    $region36: #{_resblock_impl.3} parent=5 // pred_fallthru
      _
    %p445 = scmp.le.s32.totalorder 2, %s12
    // Predicated region
    $region45: #{_resblock_impl.3} parent=5 // pred_check
      %p446 = pneg %p445
    $region46: #{_resblock_impl.3} parent=5 // pred_check_branch
      %448 = sbr.rel (%p446) target = $region48
    $region47: #{_resblock_impl.3} parent=5 // pred_region
      %s449 = ssub.s32 %s12, 2
      // Predicated region
      $region49: #{_resblock_impl.3} parent=47 // pred_check
        %p450 = pneg %p146
      $region50: #{_resblock_impl.3} parent=47 // pred_check_branch
        %452 = sbr.rel (%p450) target = $region52
      $region51: #{_resblock_impl.3} parent=47 // pred_region
        %s453 = smul.u32 4, %s24
        %p454 = scmp.lt.s32.totalorder %s23, 1
        %s455 = scalar_select %p454, %s23, 1
        %p456 = scmp.lt.s32.totalorder %s453, 7
        %s457 = scalar_select %p456, %s453, 7
        %s458 = smul.addr %s455, 8
        %s459 = sadd.s32 %s457, %s458
        %s460 = smul.addr %s459, 8
        %s461 = scalar_lea.vmem %s4, %s460
      $region52: #{_resblock_impl.3} parent=47 // pred_fallthru
        _
      // Predicated region
      $region53: #{_resblock_impl.3} parent=47 // pred_check
        %p462 = pneg %p174
      $region54: #{_resblock_impl.3} parent=47 // pred_check_branch
        %464 = sbr.rel (%p462) target = $region56
      $region55: #{_resblock_impl.3} parent=47 // pred_region
        %p465 = scmp.lt.s32.totalorder %s23, 1
        %s466 = scalar_select %p465, %s23, 1
        %p467 = scmp.lt.s32.totalorder %s24, 1
        %s468 = scalar_select %p467, %s24, 1
        %s469 = smul.addr %s466, 2
        %s470 = sadd.s32 %s468, %s469
        %s471 = smul.addr %s470, 2
        %s472 = scalar_lea.vmem %s5, %s471
      $region56: #{_resblock_impl.3} parent=47 // pred_fallthru
        _
    $region48: #{_resblock_impl.3} parent=5 // pred_fallthru
      _
  $region6: #{_resblock_impl.3} parent=0 // loop_footer
    %s16 = sadd.s32 1, %s12
  $region7: #{_resblock_impl.3} parent=0 // loop_footer_branch
    %11 = sbr.rel target = $region3
  $region8: #{_resblock_impl.3} parent=0 // loop_exit
    _

// kernel: _resblock_impl.4
$region0: #{_resblock_impl.4}
  #allocation0 [shape = 'u32[]', space=smem, size = 0x4, offset = 0x4, fixed_abs, tag = 'smem constant byte address 0x4 - core index']
  #allocation1 [shape = 'u32[144,128]{1,0:T(1,128)}', space=vmem, size = 0x12000, scoped, tag = 'internal scratch']
  %s0 = inlined_call_operand.vmem [shape: f32[2,8,8,8], index: 0, kind: input, shape index: {}]
  %s1 = inlined_call_operand.vmem [shape: f32[1,8], index: 1, kind: input, shape index: {}]
  %s2 = inlined_call_operand.vmem [shape: f32[1,8], index: 2, kind: input, shape index: {}]
  %s3 = inlined_call_operand.vmem [shape: bf16[72,8], index: 3, kind: input, shape index: {}]
  %s4 = inlined_call_operand.vmem [shape: f32[2,8,8,8], index: 4, kind: output, shape index: {0}]
  %s5 = inlined_call_operand.vmem [shape: f32[2,1,2,8], index: 5, kind: output, shape index: {1}]
  %6 = xla_tuple %s4, %s5
  %s7 = sld [smem:[#allocation0]]
  $region57: #{_resblock_impl.4} parent=0
    _
  %s9 = ssub.s32 1, %s7
  %s10 = scalar_select 0, %s9, %s7
  loop: start=0, step=1, limit=4
  $region2: #{_resblock_impl.4} parent=0 // loop_pre_header
    _
  $region3: #{_resblock_impl.4} parent=0 // loop_header
    %s12 = sphi 0, %s16
    %p13 = scmp.ge.s32.totalorder %s12, 4
    %s22 = sphi 0, %s24
    %s25 = sphi 0, %s22
    %s26 = sphi 0, %s25
    %s42 = sphi 0, %s26
    %s46 = sphi 0, %s46
    %s48 = sphi 0, %s46
    %s49 = sphi 0, %s48
    %s63 = sphi 0, %s49
    %s67 = sphi 0, %s67
    %s69 = sphi 0, %s67
    %s70 = sphi 0, %s69
    %s84 = sphi 0, %s70
    %s88 = sphi 0, %s88
    %s90 = sphi 0, %s88
    %s91 = sphi 0, %s90
    %s105 = sphi 0, %s91
    %s111 = sphi 0, %s113
    %s114 = sphi 0, %s111
    %s115 = sphi 0, %s114
    %s131 = sphi 0, %s115
    %s137 = sphi 0, %s139
    %s140 = sphi 0, %s137
    %s141 = sphi 0, %s140
    %s157 = sphi 0, %s141
  $region4: #{_resblock_impl.4} parent=0 // loop_header_branch
    %15 = sbr.rel (%p13) target = $region8
  $region5: #{_resblock_impl.4} parent=0 // loop_body
    %s17 = ssub.s32 %s12, 1
    %s18 = ssub.s32 %s12, 2
    %s19 = sadd.s32 %s12, 1
    %s20 = ssub.s32 %s12, %s19
    %p21 = scmp.eq.s32.totalorder %s20, 0
    %s23 = sadd.s32 %s22, 1
    %s24 = scalar_select %p21, %s22, %s23
    %p27 = pneg %p21
    %p28 = scmp.eq.s32.totalorder %s12, 1
    %p29 = por %p27, %p28
    %p30 = scmp.ne.s32.totalorder %s22, %s25
    %p31 = scmp.eq.s32.totalorder %s12, 0
    %p32 = por %p30, %p31
    %p33 = scmp.ne.s32.totalorder %s22, %s25
    %p34 = scmp.eq.s32.totalorder %s17, 1
    %p35 = por %p33, %p34
    %p36 = scmp.ne.s32.totalorder %s25, %s26
    %p37 = scmp.eq.s32.totalorder %s17, 0
    %p38 = por %p36, %p37
    %p39 = scmp.ne.s32.totalorder %s25, %s26
    %p40 = scmp.eq.s32.totalorder %s18, 1
    %p41 = por %p39, %p40
    %p43 = scmp.ne.s32.totalorder %s26, %s42
    %p44 = scmp.eq.s32.totalorder %s18, 0
    %p45 = por %p43, %p44
    %s47 = sadd.s32 %s46, 1
    %p50 = scmp.eq.s32.totalorder %s12, 1
    %p51 = scmp.ne.s32.totalorder %s46, %s48
    %p52 = scmp.eq.s32.totalorder %s12, 0
    %p53 = por %p51, %p52
    %p54 = scmp.ne.s32.totalorder %s46, %s48
    %p55 = scmp.eq.s32.totalorder %s17, 1
    %p56 = por %p54, %p55
    %p57 = scmp.ne.s32.totalorder %s48, %s49
    %p58 = scmp.eq.s32.totalorder %s17, 0
    %p59 = por %p57, %p58
    %p60 = scmp.ne.s32.totalorder %s48, %s49
    %p61 = scmp.eq.s32.totalorder %s18, 1
    %p62 = por %p60, %p61
    %p64 = scmp.ne.s32.totalorder %s49, %s63
    %p65 = scmp.eq.s32.totalorder %s18, 0
    %p66 = por %p64, %p65
    %s68 = sadd.s32 %s67, 1
    %p71 = scmp.eq.s32.totalorder %s12, 1
    %p72 = scmp.ne.s32.totalorder %s67, %s69
    %p73 = scmp.eq.s32.totalorder %s12, 0
    %p74 = por %p72, %p73
    %p75 = scmp.ne.s32.totalorder %s67, %s69
    %p76 = scmp.eq.s32.totalorder %s17, 1
    %p77 = por %p75, %p76
    %p78 = scmp.ne.s32.totalorder %s69, %s70
    %p79 = scmp.eq.s32.totalorder %s17, 0
    %p80 = por %p78, %p79
    %p81 = scmp.ne.s32.totalorder %s69, %s70
    %p82 = scmp.eq.s32.totalorder %s18, 1
    %p83 = por %p81, %p82
    %p85 = scmp.ne.s32.totalorder %s70, %s84
    %p86 = scmp.eq.s32.totalorder %s18, 0
    %p87 = por %p85, %p86
    %s89 = sadd.s32 %s88, 1
    %p92 = scmp.eq.s32.totalorder %s12, 1
    %p93 = scmp.ne.s32.totalorder %s88, %s90
    %p94 = scmp.eq.s32.totalorder %s12, 0
    %p95 = por %p93, %p94
    %p96 = scmp.ne.s32.totalorder %s88, %s90
    %p97 = scmp.eq.s32.totalorder %s17, 1
    %p98 = por %p96, %p97
    %p99 = scmp.ne.s32.totalorder %s90, %s91
    %p100 = scmp.eq.s32.totalorder %s17, 0
    %p101 = por %p99, %p100
    %p102 = scmp.ne.s32.totalorder %s90, %s91
    %p103 = scmp.eq.s32.totalorder %s18, 1
    %p104 = por %p102, %p103
    %p106 = scmp.ne.s32.totalorder %s91, %s105
    %p107 = scmp.eq.s32.totalorder %s18, 0
    %p108 = por %p106, %p107
    %s109 = ssub.s32 %s12, %s19
    %p110 = scmp.eq.s32.totalorder %s109, 0
    %s112 = sadd.s32 %s111, 1
    %s113 = scalar_select %p110, %s111, %s112
    %p116 = pneg %p110
    %p117 = scmp.eq.s32.totalorder %s12, 1
    %p118 = por %p116, %p117
    %p119 = scmp.ne.s32.totalorder %s111, %s114
    %p120 = scmp.eq.s32.totalorder %s12, 0
    %p121 = por %p119, %p120
    %p122 = scmp.ne.s32.totalorder %s111, %s114
    %p123 = scmp.eq.s32.totalorder %s17, 1
    %p124 = por %p122, %p123
    %p125 = scmp.ne.s32.totalorder %s114, %s115
    %p126 = scmp.eq.s32.totalorder %s17, 0
    %p127 = por %p125, %p126
    %p128 = scmp.ne.s32.totalorder %s114, %s115
    %p129 = scmp.eq.s32.totalorder %s18, 1
    %p130 = por %p128, %p129
    %p132 = scmp.ne.s32.totalorder %s115, %s131
    %p133 = scmp.eq.s32.totalorder %s18, 0
    %p134 = por %p132, %p133
    %s135 = ssub.s32 %s12, %s19
    %p136 = scmp.eq.s32.totalorder %s135, 0
    %s138 = sadd.s32 %s137, 1
    %s139 = scalar_select %p136, %s137, %s138
    %p142 = pneg %p136
    %p143 = scmp.eq.s32.totalorder %s12, 1
    %p144 = por %p142, %p143
    %p145 = scmp.ne.s32.totalorder %s137, %s140
    %p146 = scmp.eq.s32.totalorder %s12, 0
    %p147 = por %p145, %p146
    %p148 = scmp.ne.s32.totalorder %s137, %s140
    %p149 = scmp.eq.s32.totalorder %s17, 1
    %p150 = por %p148, %p149
    %p151 = scmp.ne.s32.totalorder %s140, %s141
    %p152 = scmp.eq.s32.totalorder %s17, 0
    %p153 = por %p151, %p152
    %p154 = scmp.ne.s32.totalorder %s140, %s141
    %p155 = scmp.eq.s32.totalorder %s18, 1
    %p156 = por %p154, %p155
    %p158 = scmp.ne.s32.totalorder %s141, %s157
    %p159 = scmp.eq.s32.totalorder %s18, 0
    %p160 = por %p158, %p159
    %p161 = scmp.le.s32.totalorder 1, %s12
    %p162 = scmp.lt.s32.totalorder %s12, 3
    %p163 = pnand %p161, %p162
    %p164 = pneg %p163
    // Predicated region
    $region9: #{_resblock_impl.4} parent=5 // pred_check
      _
    $region10: #{_resblock_impl.4} parent=5 // pred_check_branch
      %166 = sbr.rel (%p163) target = $region12
    $region11: #{_resblock_impl.4} parent=5 // pred_region
      %s167 = ssub.s32 %s12, 1
      // Predicated region
      $region13: #{_resblock_impl.4} parent=11 // pred_check
        %p168 = pneg %p59
      $region14: #{_resblock_impl.4} parent=11 // pred_check_branch
        %170 = sbr.rel (%p168) target = $region16
      $region15: #{_resblock_impl.4} parent=11 // pred_region
        _
      $region16: #{_resblock_impl.4} parent=11 // pred_fallthru
        _
      // Predicated region
      $region17: #{_resblock_impl.4} parent=11 // pred_check
        %p171 = pneg %p80
      $region18: #{_resblock_impl.4} parent=11 // pred_check_branch
        %173 = sbr.rel (%p171) target = $region20
      $region19: #{_resblock_impl.4} parent=11 // pred_region
        _
      $region20: #{_resblock_impl.4} parent=11 // pred_fallthru
        _
      // Predicated region
      $region21: #{_resblock_impl.4} parent=11 // pred_check
        %p174 = pneg %p101
      $region22: #{_resblock_impl.4} parent=11 // pred_check_branch
        %176 = sbr.rel (%p174) target = $region24
      $region23: #{_resblock_impl.4} parent=11 // pred_region
        _
      $region24: #{_resblock_impl.4} parent=11 // pred_fallthru
        _
    $region12: #{_resblock_impl.4} parent=5 // pred_fallthru
      _
    %p177 = scmp.lt.s32.totalorder %s12, 2
    // Predicated region
    $region25: #{_resblock_impl.4} parent=5 // pred_check
      %p178 = pneg %p177
    $region26: #{_resblock_impl.4} parent=5 // pred_check_branch
      %180 = sbr.rel (%p178) target = $region28
    $region27: #{_resblock_impl.4} parent=5 // pred_region
      // Predicated region
      $region29: #{_resblock_impl.4} parent=27 // pred_check
        %p181 = pneg %p32
      $region30: #{_resblock_impl.4} parent=27 // pred_check_branch
        %183 = sbr.rel (%p181) target = $region32
      $region31: #{_resblock_impl.4} parent=27 // pred_region
        %p184 = scmp.lt.s32.totalorder %s12, 1
        %s185 = scalar_select %p184, %s12, 1
        %s186 = smul.addr %s185, 8
        %s187 = smul.addr %s186, 8
        %s188 = scalar_lea.vmem %s0, %s187
      $region32: #{_resblock_impl.4} parent=27 // pred_fallthru
        _
    $region28: #{_resblock_impl.4} parent=5 // pred_fallthru
      _
    %p189 = scmp.le.s32.totalorder 1, %s12
    %p190 = scmp.lt.s32.totalorder %s12, 3
    %p191 = pnand %p189, %p190
    %p192 = pneg %p191
    // Predicated region
    $region33: #{_resblock_impl.4} parent=5 // pred_check
      _
    $region34: #{_resblock_impl.4} parent=5 // pred_check_branch
      %194 = sbr.rel (%p191) target = $region36
    $region35: #{_resblock_impl.4} parent=5 // pred_region
      %s195 = ssub.s32 %s12, 1
      %p196 = scmp.lt.s32.totalorder %s17, 1
      %s197 = scalar_select %p196, %s17, 1
      %s198 = smul.addr %s197, 8
      %s199 = smul.addr %s198, 8
      %s200 = scalar_lea.vmem %s0, %s199
      %p201 = pneg %p38
      %p202 = pneg %p35
      %p203 = pneg %p59
      %p204 = pneg %p56
      %p205 = pneg %p80
      %p206 = pneg %p77
      %p207 = pneg %p101
      %p208 = pneg %p98
      %p209 = pneg %p127
      %p210 = pneg %p124
      %p211 = scmp.lt.s32.totalorder %s17, 1
      %s212 = scalar_select %p211, %s17, 1
      %s213 = smul.addr %s212, 8
      %s214 = smul.addr %s213, 8
      %s215 = scalar_lea.vmem %s4, %s214
      %p216 = pneg %p153
      %p217 = pneg %p150
      %p218 = scmp.lt.s32.totalorder %s17, 1
      %s219 = scalar_select %p218, %s17, 1
      %s220 = smul.addr %s219, 2
      %s221 = scalar_lea.vmem %s5, %s220
      %p222 = scmp.lt.s32.totalorder %s17, 1
      %s223 = scalar_select %p222, %s17, 1
      %s224 = smul.addr %s223, 8
      %s225 = smul.addr %s224, 8
      %s226 = scalar_lea.vmem %s0, %s225
      %p227 = scmp.lt.s32.totalorder %s17, 1
      %s228 = scalar_select %p227, %s17, 1
      %s229 = smul.addr %s228, 8
      %s230 = smul.addr %s229, 8
      %s231 = scalar_lea.vmem %s4, %s230
      %p232 = scmp.lt.s32.totalorder %s17, 1
      %s233 = scalar_select %p232, %s17, 1
      %s234 = smul.addr %s233, 2
      %s235 = scalar_lea.vmem %s5, %s234
      %v237 = vld [vmem:[%s226] sm:$0xff]
      %v238 = vld [vmem:[%s226 + $0x8] sm:$0xff]
      %v239 = vld [vmem:[%s226 + $0x10] sm:$0xff]
      %v240 = vld [vmem:[%s226 + $0x18] sm:$0xff]
      %v241 = vld [vmem:[%s226 + $0x20] sm:$0xff]
      %v242 = vld [vmem:[%s226 + $0x28] sm:$0xff]
      %v243 = vld [vmem:[%s226 + $0x30] sm:$0xff]
      %v244 = vld [vmem:[%s226 + $0x38] sm:$0xff]
      %v245 = vld [vmem:[%s1] sm:$0x1]
      %v246 = vld [vmem:[%s2] sm:$0x1]
      %v248 = vlaneseq
      %v249 = vshrl.u32 %v248, 7
      %v250 = vsub.s32 0, %v249
      %v251 = vrot.slane %v245, %v250
      %v253 = vmul.f32 %v237, %v251
      %v254 = vmul.f32 %v238, %v251
      %v255 = vmul.f32 %v239, %v251
      %v256 = vmul.f32 %v240, %v251
      %v257 = vmul.f32 %v241, %v251
      %v258 = vmul.f32 %v242, %v251
      %v259 = vmul.f32 %v243, %v251
      %v260 = vmul.f32 %v244, %v251
      %v262 = vlaneseq
      %v263 = vshrl.u32 %v262, 7
      %v264 = vsub.s32 0, %v263
      %v265 = vrot.slane %v246, %v264
      %v267 = vadd.f32 %v253, %v265
      %v268 = vadd.f32 %v254, %v265
      %v269 = vadd.f32 %v255, %v265
      %v270 = vadd.f32 %v256, %v265
      %v271 = vadd.f32 %v257, %v265
      %v272 = vadd.f32 %v258, %v265
      %v273 = vadd.f32 %v259, %v265
      %v274 = vadd.f32 %v260, %v265
      %v275 = vmax.f32 %v267, 0.0
      %v276 = vmax.f32 %v268, 0.0
      %v277 = vmax.f32 %v269, 0.0
      %v278 = vmax.f32 %v270, 0.0
      %v279 = vmax.f32 %v271, 0.0
      %v280 = vmax.f32 %v272, 0.0
      %v281 = vmax.f32 %v273, 0.0
      %v282 = vmax.f32 %v274, 0.0
      %v291 = vrot.slane 0.0, 7
      %v292 = vrot.slane %v275, 7
      %v293 = vrot.slane %v276, 7
      %v294 = vrot.slane %v277, 7
      %v295 = vrot.slane %v278, 7
      %v296 = vrot.slane %v279, 7
      %v297 = vrot.slane %v280, 7
      %v298 = vrot.slane %v281, 7
      %vm307 = vcmask 1040384
      %v308 = vsel %vm307, 0.0, %v291
      %v309 = vsel %vm307, 0.0, %v292
      %v310 = vsel %vm307, 0.0, %v293
      %v311 = vsel %vm307, 0.0, %v294
      %v312 = vsel %vm307, 0.0, %v295
      %v313 = vsel %vm307, 0.0, %v296
      %v314 = vsel %vm307, 0.0, %v297
      %v315 = vsel %vm307, 0.0, %v298
      %v316 = vpack.c.bf16 %v308, %v308
      %v317 = vpack.c.bf16 %v309, %v309
      %v318 = vpack.c.bf16 %v310, %v310
      %v319 = vpack.c.bf16 %v311, %v311
      %v320 = vpack.c.bf16 %v312, %v312
      %v321 = vpack.c.bf16 %v313, %v313
      %v322 = vpack.c.bf16 %v314, %v314
      %v323 = vpack.c.bf16 %v315, %v315
      %v324 = vpack.c.bf16 0.0, 0.0
      %v325 = vpack.c.bf16 %v275, %v275
      %v326 = vpack.c.bf16 %v276, %v276
      %v327 = vpack.c.bf16 %v277, %v277
      %v328 = vpack.c.bf16 %v278, %v278
      %v329 = vpack.c.bf16 %v279, %v279
      %v330 = vpack.c.bf16 %v280, %v280
      %v331 = vpack.c.bf16 %v281, %v281
      %v332 = vrot.slane 0.0, 1
      %v333 = vrot.slane %v275, 1
      %v334 = vrot.slane %v276, 1
      %v335 = vrot.slane %v277, 1
      %v336 = vrot.slane %v278, 1
      %v337 = vrot.slane %v279, 1
      %v338 = vrot.slane %v280, 1
      %v339 = vrot.slane %v281, 1
      %vm348 = vcmask 1046528
      %v349 = vsel %vm348, %v332, 0.0
      %v350 = vsel %vm348, %v333, 0.0
      %v351 = vsel %vm348, %v334, 0.0
      %v352 = vsel %vm348, %v335, 0.0
      %v353 = vsel %vm348, %v336, 0.0
      %v354 = vsel %vm348, %v337, 0.0
      %v355 = vsel %vm348, %v338, 0.0
      %v356 = vsel %vm348, %v339, 0.0
      %v357 = vpack.c.bf16 %v349, %v349
      %v358 = vpack.c.bf16 %v350, %v350
      %v359 = vpack.c.bf16 %v351, %v351
      %v360 = vpack.c.bf16 %v352, %v352
      %v361 = vpack.c.bf16 %v353, %v353
      %v362 = vpack.c.bf16 %v354, %v354
      %v363 = vpack.c.bf16 %v355, %v355
      %v364 = vpack.c.bf16 %v356, %v356
      %v366 = vrot.slane %v282, 7
      %v368 = vsel %vm307, 0.0, %v366
      %v369 = vpack.c.bf16 %v368, %v368
      %v370 = vpack.c.bf16 %v282, %v282
      %v371 = vrot.slane %v282, 1
      %v373 = vsel %vm348, %v371, 0.0
      %v374 = vpack.c.bf16 %v373, %v373
      %383 = vrot.lane.b32.xlu0 %v324, 8
      %v384 = vpop.permute.xlu0 %383
      %385 = vrot.lane.b32.xlu0 %v325, 8
      %v386 = vpop.permute.xlu0 %385
      %387 = vrot.lane.b32.xlu0 %v326, 8
      %v388 = vpop.permute.xlu0 %387
      %389 = vrot.lane.b32.xlu0 %v327, 8
      %v390 = vpop.permute.xlu0 %389
      %391 = vrot.lane.b32.xlu0 %v328, 8
      %v392 = vpop.permute.xlu0 %391
      %393 = vrot.lane.b32.xlu0 %v329, 8
      %v394 = vpop.permute.xlu0 %393
      %395 = vrot.lane.b32.xlu0 %v330, 8
      %v396 = vpop.permute.xlu0 %395
      %397 = vrot.lane.b32.xlu0 %v331, 8
      %v398 = vpop.permute.xlu0 %397
      %407 = vrot.lane.b32.xlu0 %v357, 16
      %v408 = vpop.permute.xlu0 %407
      %409 = vrot.lane.b32.xlu0 %v358, 16
      %v410 = vpop.permute.xlu0 %409
      %411 = vrot.lane.b32.xlu0 %v359, 16
      %v412 = vpop.permute.xlu0 %411
      %413 = vrot.lane.b32.xlu0 %v360, 16
      %v414 = vpop.permute.xlu0 %413
      %415 = vrot.lane.b32.xlu0 %v361, 16
      %v416 = vpop.permute.xlu0 %415
      %417 = vrot.lane.b32.xlu0 %v362, 16
      %v418 = vpop.permute.xlu0 %417
      %419 = vrot.lane.b32.xlu0 %v363, 16
      %v420 = vpop.permute.xlu0 %419
      %421 = vrot.lane.b32.xlu0 %v364, 16
      %v422 = vpop.permute.xlu0 %421
      %431 = vrot.lane.b32.xlu0 %v317, 24
      %v432 = vpop.permute.xlu0 %431
      %433 = vrot.lane.b32.xlu0 %v318, 24
      %v434 = vpop.permute.xlu0 %433
      %435 = vrot.lane.b32.xlu0 %v319, 24
      %v436 = vpop.permute.xlu0 %435
      %437 = vrot.lane.b32.xlu0 %v320, 24
      %v438 = vpop.permute.xlu0 %437
      %439 = vrot.lane.b32.xlu0 %v321, 24
      %v440 = vpop.permute.xlu0 %439
      %441 = vrot.lane.b32.xlu0 %v322, 24
      %v442 = vpop.permute.xlu0 %441
      %443 = vrot.lane.b32.xlu0 %v323, 24
      %v444 = vpop.permute.xlu0 %443
      %445 = vrot.lane.b32.xlu0 %v369, 24
      %v446 = vpop.permute.xlu0 %445
      %448 = vrot.lane.b32.xlu0 %v325, 32
      %v449 = vpop.permute.xlu0 %448
      %450 = vrot.lane.b32.xlu0 %v326, 32
      %v451 = vpop.permute.xlu0 %450
      %452 = vrot.lane.b32.xlu0 %v327, 32
      %v453 = vpop.permute.xlu0 %452
      %454 = vrot.lane.b32.xlu0 %v328, 32
      %v455 = vpop.permute.xlu0 %454
      %456 = vrot.lane.b32.xlu0 %v329, 32
      %v457 = vpop.permute.xlu0 %456
      %458 = vrot.lane.b32.xlu0 %v330, 32
      %v459 = vpop.permute.xlu0 %458
      %460 = vrot.lane.b32.xlu0 %v331, 32
      %v461 = vpop.permute.xlu0 %460
      %462 = vrot.lane.b32.xlu0 %v370, 32
      %v463 = vpop.permute.xlu0 %462
      %465 = vrot.lane.b32.xlu0 %v358, 40
      %v466 = vpop.permute.xlu0 %465
      %467 = vrot.lane.b32.xlu0 %v359, 40
      %v468 = vpop.permute.xlu0 %467
      %469 = vrot.lane.b32.xlu0 %v360, 40
      %v470 = vpop.permute.xlu0 %469
      %471 = vrot.lane.b32.xlu0 %v361, 40
      %v472 = vpop.permute.xlu0 %471
      %473 = vrot.lane.b32.xlu0 %v362, 40
      %v474 = vpop.permute.xlu0 %473
      %475 = vrot.lane.b32.xlu0 %v363, 40
      %v476 = vpop.permute.xlu0 %475
      %477 = vrot.lane.b32.xlu0 %v364, 40
      %v478 = vpop.permute.xlu0 %477
      %479 = vrot.lane.b32.xlu0 %v374, 40
      %v480 = vpop.permute.xlu0 %479
      %482 = vrot.lane.b32.xlu0 %v318, 48
      %v483 = vpop.permute.xlu0 %482
      %484 = vrot.lane.b32.xlu0 %v319, 48
      %v485 = vpop.permute.xlu0 %484
      %486 = vrot.lane.b32.xlu0 %v320, 48
      %v487 = vpop.permute.xlu0 %486
      %488 = vrot.lane.b32.xlu0 %v321, 48
      %v489 = vpop.permute.xlu0 %488
      %490 = vrot.lane.b32.xlu0 %v322, 48
      %v491 = vpop.permute.xlu0 %490
      %492 = vrot.lane.b32.xlu0 %v323, 48
      %v493 = vpop.permute.xlu0 %492
      %494 = vrot.lane.b32.xlu0 %v369, 48
      %v495 = vpop.permute.xlu0 %494
      %496 = vrot.lane.b32.xlu0 %v316, 48
      %v497 = vpop.permute.xlu0 %496
      %498 = vrot.lane.b32.xlu0 %v326, 56
      %v499 = vpop.permute.xlu0 %498
      %500 = vrot.lane.b32.xlu0 %v327, 56
      %v501 = vpop.permute.xlu0 %500
      %502 = vrot.lane.b32.xlu0 %v328, 56
      %v503 = vpop.permute.xlu0 %502
      %504 = vrot.lane.b32.xlu0 %v329, 56
      %v505 = vpop.permute.xlu0 %504
      %506 = vrot.lane.b32.xlu0 %v330, 56
      %v507 = vpop.permute.xlu0 %506
      %508 = vrot.lane.b32.xlu0 %v331, 56
      %v509 = vpop.permute.xlu0 %508
      %510 = vrot.lane.b32.xlu0 %v370, 56
      %v511 = vpop.permute.xlu0 %510
      %512 = vrot.lane.b32.xlu0 %v324, 56
      %v513 = vpop.permute.xlu0 %512
      %514 = vrot.lane.b32.xlu0 %v359, 64
      %v515 = vpop.permute.xlu0 %514
      %516 = vrot.lane.b32.xlu0 %v360, 64
      %v517 = vpop.permute.xlu0 %516
      %518 = vrot.lane.b32.xlu0 %v361, 64
      %v519 = vpop.permute.xlu0 %518
      %520 = vrot.lane.b32.xlu0 %v362, 64
      %v521 = vpop.permute.xlu0 %520
      %522 = vrot.lane.b32.xlu0 %v363, 64
      %v523 = vpop.permute.xlu0 %522
      %524 = vrot.lane.b32.xlu0 %v364, 64
      %v525 = vpop.permute.xlu0 %524
      %526 = vrot.lane.b32.xlu0 %v374, 64
      %v527 = vpop.permute.xlu0 %526
      %528 = vrot.lane.b32.xlu0 %v357, 64
      %v529 = vpop.permute.xlu0 %528
      %vm530 = vcmask 64512
      %v533 = vsel %vm530, %v316, %v384
      %v536 = vsel %vm530, %v317, %v386
      %v539 = vsel %vm530, %v318, %v388
      %v542 = vsel %vm530, %v319, %v390
      %v545 = vsel %vm530, %v320, %v392
      %v548 = vsel %vm530, %v321, %v394
      %v551 = vsel %vm530, %v322, %v396
      %v554 = vsel %vm530, %v323, %v398
      %vm555 = vcmask 130048
      %v557 = vsel %vm555, %v533, %v408
      %v559 = vsel %vm555, %v536, %v410
      %v561 = vsel %vm555, %v539, %v412
      %v563 = vsel %vm555, %v542, %v414
      %v565 = vsel %vm555, %v545, %v416
      %v567 = vsel %vm555, %v548, %v418
      %v569 = vsel %vm555, %v551, %v420
      %v571 = vsel %vm555, %v554, %v422
      %vm572 = vcmask 195584
      %v574 = vsel %vm572, %v557, %v432
      %v576 = vsel %vm572, %v559, %v434
      %v578 = vsel %vm572, %v561, %v436
      %v580 = vsel %vm572, %v563, %v438
      %v582 = vsel %vm572, %v565, %v440
      %v584 = vsel %vm572, %v567, %v442
      %v586 = vsel %vm572, %v569, %v444
      %v588 = vsel %vm572, %v571, %v446
      %vm589 = vcmask 261120
      %v591 = vsel %vm589, %v574, %v449
      %v593 = vsel %vm589, %v576, %v451
      %v595 = vsel %vm589, %v578, %v453
      %v597 = vsel %vm589, %v580, %v455
      %v599 = vsel %vm589, %v582, %v457
      %v601 = vsel %vm589, %v584, %v459
      %v603 = vsel %vm589, %v586, %v461
      %v605 = vsel %vm589, %v588, %v463
      %vm606 = vcmask 326656
      %v608 = vsel %vm606, %v591, %v466
      %v610 = vsel %vm606, %v593, %v468
      %v612 = vsel %vm606, %v595, %v470
      %v614 = vsel %vm606, %v597, %v472
      %v616 = vsel %vm606, %v599, %v474
      %v618 = vsel %vm606, %v601, %v476
      %v620 = vsel %vm606, %v603, %v478
      %v622 = vsel %vm606, %v605, %v480
      %vm623 = vcmask 392192
      %v625 = vsel %vm623, %v608, %v483
      %v627 = vsel %vm623, %v610, %v485
      %v629 = vsel %vm623, %v612, %v487
      %v631 = vsel %vm623, %v614, %v489
      %v633 = vsel %vm623, %v616, %v491
      %v635 = vsel %vm623, %v618, %v493
      %v637 = vsel %vm623, %v620, %v495
      %v639 = vsel %vm623, %v622, %v497
      %vm640 = vcmask 457728
      %v642 = vsel %vm640, %v625, %v499
      %v644 = vsel %vm640, %v627, %v501
      %v646 = vsel %vm640, %v629, %v503
      %v648 = vsel %vm640, %v631, %v505
      %v650 = vsel %vm640, %v633, %v507
      %v652 = vsel %vm640, %v635, %v509
      %v654 = vsel %vm640, %v637, %v511
      %v656 = vsel %vm640, %v639, %v513
      %vm657 = vcmask 523264
      %v659 = vsel %vm657, %v642, %v515
      %v661 = vsel %vm657, %v644, %v517
      %v663 = vsel %vm657, %v646, %v519
      %v665 = vsel %vm657, %v648, %v521
      %v667 = vsel %vm657, %v650, %v523
      %v669 = vsel %vm657, %v652, %v525
      %v671 = vsel %vm657, %v654, %v527
      %v673 = vsel %vm657, %v656, %v529
      %v674 = vld [vmem:[%s3] sm:$0xf]
      %v675 = vld [vmem:[%s3 + $0x4] sm:$0xf]
      %v676 = vld [vmem:[%s3 + $0x8] sm:$0xf]
      %v677 = vld [vmem:[%s3 + $0xc] sm:$0xf]
      %v678 = vld [vmem:[%s3 + $0x10] sm:$0xf]
      %v679 = vld [vmem:[%s3 + $0x14] sm:$0xf]
      %v680 = vld [vmem:[%s3 + $0x18] sm:$0xf]
      %v681 = vld [vmem:[%s3 + $0x1c] sm:$0xf]
      %v682 = vld [vmem:[%s3 + $0x20] sm:$0xf]
      %v691 = vunpack.c.l.b16 %v659
      %v692 = vunpack.c.l.b16 %v661
      %v693 = vunpack.c.l.b16 %v663
      %v694 = vunpack.c.l.b16 %v665
      %v695 = vunpack.c.l.b16 %v667
      %v696 = vunpack.c.l.b16 %v669
      %v697 = vunpack.c.l.b16 %v671
      %v698 = vunpack.c.l.b16 %v673
      %v699 = vpack.c.b16 %v692, %v691
      %v700 = vpack.c.b16 %v694, %v693
      %v701 = vpack.c.b16 %v696, %v695
      %v702 = vpack.c.b16 %v698, %v697
      %v712 = vunpack.c.l.b16 %v674
      %v713 = vunpack.c.l.b16 %v675
      %v714 = vunpack.c.l.b16 %v676
      %v715 = vunpack.c.l.b16 %v677
      %v716 = vunpack.c.l.b16 %v678
      %v717 = vunpack.c.l.b16 %v679
      %v718 = vunpack.c.l.b16 %v680
      %v719 = vunpack.c.l.b16 %v681
      %v720 = vunpack.c.l.b16 %v682
      %v721 = vpack.c.b16 %v713, %v712
      %v722 = vpack.c.b16 %v715, %v714
      %v723 = vpack.c.b16 %v717, %v716
      %v724 = vpack.c.b16 %v719, %v718
      %v725 = vpack.c.b16 %v720, %v720
      %vm730 = vcmask 588800
      %v732 = vsel %vm730, %v699, 0
      %v735 = vsel %vm730, %v700, 0
      %v738 = vsel %vm730, %v701, 0
      %v741 = vsel %vm730, %v702, 0
      %vm743 = vcmask 1043456
      %v745 = vsel %vm743, %v725, 0
      %747 = vmatprep.subr.bf16.mxu0 0
      %748 = vmatpush1.bf16.msra.mxu0 0
      %749 = vmatprep.subr.bf16.mxu0 0
      %750 = vmatpush1.bf16.msra.mxu0 0
      %751 = vmatprep.subr.bf16.mxu0 0
      %752 = vmatpush1.bf16.msra.mxu0 0
      %753 = vmatprep.subr.bf16.mxu0 0
      %754 = vmatpush1.bf16.msra.mxu0 %v745
      %755 = vmatprep.subr.bf16.mxu0 0
      %756 = vmatpush1.bf16.msra.mxu0 %v724
      %757 = vmatprep.subr.bf16.mxu0 0
      %758 = vmatpush1.bf16.msra.mxu0 %v723
      %759 = vmatprep.subr.bf16.mxu0 0
      %760 = vmatpush1.bf16.msra.mxu0 %v722
      %761 = vmatprep.subr.bf16.mxu0 0
      %762 = vmatpush1.bf16.msra.mxu0 %v721
      %763 = vmatprep.subr.bf16.mxu0 0
      %764 = vmatpush2.bf16.msra.mxu0 0
      %765 = vmatprep.subr.bf16.mxu0 0
      %766 = vmatpush2.bf16.msra.mxu0 0
      %767 = vmatprep.subr.bf16.mxu0 0
      %768 = vmatpush2.bf16.msra.mxu0 0
      %769 = vmatprep.subr.bf16.mxu0 0
      %770 = vmatpush2.bf16.msra.mxu0 0
      %771 = vmatprep.subr.bf16.mxu0 0
      %772 = vmatpush2.bf16.msra.mxu0 0
      %773 = vmatprep.subr.bf16.mxu0 0
      %774 = vmatpush2.bf16.msra.mxu0 0
      %775 = vmatprep.subr.bf16.mxu0 0
      %776 = vmatpush2.bf16.msra.mxu0 0
      %777 = vmatprep.subr.bf16.mxu0 0
      %778 = vmatpush2.bf16.msra.mxu0 0
      %779 = vmatprep.mubr.bf16.mxu0 0
      %780 = vmatmul.mubr.bf16.gmra.mxu0 %v732
      %v781 = vpop.f32.mrf.mxu0
      %v782 = vadd.f32 0.0, %v781
      %v783 = vpop.f32.mrf.mxu0
      %v784 = vpop.f32.mrf.mxu0
      %v785 = vadd.f32 0.0, %v784
      %v786 = vpop.f32.mrf.mxu0
      %787 = vmatprep.mubr.bf16.mxu0 0
      %788 = vmatmul.mubr.bf16.gmra.mxu0 %v735
      %v789 = vpop.f32.mrf.mxu0
      %v790 = vadd.f32 0.0, %v789
      %v791 = vpop.f32.mrf.mxu0
      %v792 = vpop.f32.mrf.mxu0
      %v793 = vadd.f32 0.0, %v792
      %v794 = vpop.f32.mrf.mxu0
      %795 = vmatprep.mubr.bf16.mxu0 0
      %796 = vmatmul.mubr.bf16.gmra.mxu0 %v738
      %v797 = vpop.f32.mrf.mxu0
      %v798 = vadd.f32 0.0, %v797
      %v799 = vpop.f32.mrf.mxu0
      %v800 = vpop.f32.mrf.mxu0
      %v801 = vadd.f32 0.0, %v800
      %v802 = vpop.f32.mrf.mxu0
      %803 = vmatprep.mubr.bf16.mxu0 0
      %804 = vmatmul.mubr.bf16.gmra.mxu0 %v741
      %v805 = vpop.f32.mrf.mxu0
      %v806 = vadd.f32 0.0, %v805
      %v807 = vpop.f32.mrf.mxu0
      %v808 = vpop.f32.mrf.mxu0
      %v809 = vadd.f32 0.0, %v808
      %v810 = vpop.f32.mrf.mxu0
      %811 = vdwg.mxu0
      %812 = vst.msk [vmem:[%s231] sm:$0xff] %vm530, %v782
      %813 = vst.msk [vmem:[%s231 + $0x8] sm:$0xff] %vm530, %v785
      %814 = vst.msk [vmem:[%s231 + $0x10] sm:$0xff] %vm530, %v790
      %815 = vst.msk [vmem:[%s231 + $0x18] sm:$0xff] %vm530, %v793
      %816 = vst.msk [vmem:[%s231 + $0x20] sm:$0xff] %vm530, %v798
      %817 = vst.msk [vmem:[%s231 + $0x28] sm:$0xff] %vm530, %v801
      %818 = vst.msk [vmem:[%s231 + $0x30] sm:$0xff] %vm530, %v806
      %819 = vst.msk [vmem:[%s231 + $0x38] sm:$0xff] %vm530, %v809
      %v820 = vsel %vm530, %v782, 0.0
      %v821 = vsel %vm530, %v785, 0.0
      %v822 = vadd.f32 %v820, %v821
      %v823 = vsel %vm530, %v790, 0.0
      %v824 = vadd.f32 %v822, %v823
      %v825 = vsel %vm530, %v793, 0.0
      %v826 = vadd.f32 %v824, %v825
      %v827 = vsel %vm530, %v798, 0.0
      %v828 = vadd.f32 %v826, %v827
      %v829 = vsel %vm530, %v801, 0.0
      %v830 = vadd.f32 %v828, %v829
      %v831 = vsel %vm530, %v806, 0.0
      %v832 = vadd.f32 %v830, %v831
      %v833 = vsel %vm530, %v809, 0.0
      %v834 = vadd.f32 %v832, %v833
      %v835 = vrot.slane %v834, 4
      %v836 = vadd.f32 %v834, %v835
      %v837 = vrot.slane %v836, 2
      %v838 = vadd.f32 %v836, %v837
      %v839 = vrot.slane %v838, 1
      %v840 = vadd.f32 %v838, %v839
      %v841 = vmul.f32 %v782, %v782
      %v842 = vmul.f32 %v785, %v785
      %v843 = vmul.f32 %v790, %v790
      %v844 = vmul.f32 %v793, %v793
      %v845 = vmul.f32 %v798, %v798
      %v846 = vmul.f32 %v801, %v801
      %v847 = vmul.f32 %v806, %v806
      %v848 = vmul.f32 %v809, %v809
      %v849 = vsel %vm530, %v841, 0.0
      %v850 = vsel %vm530, %v842, 0.0
      %v851 = vadd.f32 %v849, %v850
      %v852 = vsel %vm530, %v843, 0.0
      %v853 = vadd.f32 %v851, %v852
      %v854 = vsel %vm530, %v844, 0.0
      %v855 = vadd.f32 %v853, %v854
      %v856 = vsel %vm530, %v845, 0.0
      %v857 = vadd.f32 %v855, %v856
      %v858 = vsel %vm530, %v846, 0.0
      %v859 = vadd.f32 %v857, %v858
      %v860 = vsel %vm530, %v847, 0.0
      %v861 = vadd.f32 %v859, %v860
      %v862 = vsel %vm530, %v848, 0.0
      %v863 = vadd.f32 %v861, %v862
      %v864 = vrot.slane %v863, 4
      %v865 = vadd.f32 %v863, %v864
      %v866 = vrot.slane %v865, 2
      %v867 = vadd.f32 %v865, %v866
      %v868 = vrot.slane %v867, 1
      %v869 = vadd.f32 %v867, %v868
      %v870 = vsel %vm307, %v840, %v869
      %vm871 = vcmask 58368
      %872 = vst.msk [vmem:[%s235] sm:$0x3] %vm871, %v870
      %p873 = scmp.lt.s32.totalorder %s17, 1
      %s874 = scalar_select %p873, %s17, 1
      %s875 = smul.addr %s874, 8
      %s876 = smul.addr %s875, 8
      %s877 = scalar_lea.vmem %s4, %s876
      %p878 = scmp.lt.s32.totalorder %s17, 1
      %s879 = scalar_select %p878, %s17, 1
      %s880 = smul.addr %s879, 2
      %s881 = scalar_lea.vmem %s5, %s880
      // Predicated region
      $region37: #{_resblock_impl.4} parent=35 // pred_check
        %p882 = pneg %p124
      $region38: #{_resblock_impl.4} parent=35 // pred_check_branch
        %884 = sbr.rel (%p882) target = $region40
      $region39: #{_resblock_impl.4} parent=35 // pred_region
        _
      $region40: #{_resblock_impl.4} parent=35 // pred_fallthru
        _
      // Predicated region
      $region41: #{_resblock_impl.4} parent=35 // pred_check
        %p885 = pneg %p150
      $region42: #{_resblock_impl.4} parent=35 // pred_check_branch
        %887 = sbr.rel (%p885) target = $region44
      $region43: #{_resblock_impl.4} parent=35 // pred_region
        _
      $region44: #{_resblock_impl.4} parent=35 // pred_fallthru
        _
    $region36: #{_resblock_impl.4} parent=5 // pred_fallthru
      _
    %p888 = scmp.le.s32.totalorder 2, %s12
    // Predicated region
    $region45: #{_resblock_impl.4} parent=5 // pred_check
      %p889 = pneg %p888
    $region46: #{_resblock_impl.4} parent=5 // pred_check_branch
      %891 = sbr.rel (%p889) target = $region48
    $region47: #{_resblock_impl.4} parent=5 // pred_region
      %s892 = ssub.s32 %s12, 2
      // Predicated region
      $region49: #{_resblock_impl.4} parent=47 // pred_check
        %p893 = pneg %p130
      $region50: #{_resblock_impl.4} parent=47 // pred_check_branch
        %895 = sbr.rel (%p893) target = $region52
      $region51: #{_resblock_impl.4} parent=47 // pred_region
        %p896 = scmp.lt.s32.totalorder %s18, 1
        %s897 = scalar_select %p896, %s18, 1
        %s898 = smul.addr %s897, 8
        %s899 = smul.addr %s898, 8
        %s900 = scalar_lea.vmem %s4, %s899
      $region52: #{_resblock_impl.4} parent=47 // pred_fallthru
        _
      // Predicated region
      $region53: #{_resblock_impl.4} parent=47 // pred_check
        %p901 = pneg %p156
      $region54: #{_resblock_impl.4} parent=47 // pred_check_branch
        %903 = sbr.rel (%p901) target = $region56
      $region55: #{_resblock_impl.4} parent=47 // pred_region
        %p904 = scmp.lt.s32.totalorder %s18, 1
        %s905 = scalar_select %p904, %s18, 1
        %s906 = smul.addr %s905, 2
        %s907 = scalar_lea.vmem %s5, %s906
      $region56: #{_resblock_impl.4} parent=47 // pred_fallthru
        _
    $region48: #{_resblock_impl.4} parent=5 // pred_fallthru
      _
  $region6: #{_resblock_impl.4} parent=0 // loop_footer
    %s16 = sadd.s32 1, %s12
  $region7: #{_resblock_impl.4} parent=0 // loop_footer_branch
    %11 = sbr.rel target = $region3
  $region8: #{_resblock_impl.4} parent=0 // loop_exit
    _

</llo_original>
